<compile_context>
chip_gen: v5e
topology: v5e:2x2
jax: 0.10.0
libtpu: 0.0.40
codegen_flags: <defaults>
</compile_context>

<pallas_src>
import jax
import jax.numpy as jnp
from jax import lax
from jax.experimental import pallas as pl
from jax.experimental.pallas import tpu as pltpu

_VMEM_LIMIT_BYTES = 32 * 1024 * 1024       # explicit; safe on v5e/v6e/v7x
_VMEM_TILE_BUDGET = 16 * 1024 * 1024       # headroom under the limit


# ---------------------------------------------------------------------------
# Pallas kernels
# ---------------------------------------------------------------------------
def _reduce1x1_kernel(x_ref, w_ref, b_ref, o_ref):
    """o = relu(w @ x + b) for one (1, red3+red5, tm) tile (lane-dense)."""
    y = jnp.dot(w_ref[...], x_ref[0], preferred_element_type=jnp.float32)
    o_ref[0] = jnp.maximum(y + b_ref[...], 0.0).astype(o_ref.dtype)


def _inception_out_kernel(x_ref, pool_ref, t3_ref, t5_ref,
                          w1_ref, w3_ref, w5_ref, wp_ref,
                          b1_ref, b3_ref, b5_ref, bp_ref, o_ref):
    """All four branches, bias + ReLU fused, one concatenated output slab."""
    def conv(w_r, t, b_r):
        y = jnp.dot(w_r[...], t, preferred_element_type=jnp.float32)
        return jnp.maximum(y + b_r[...], 0.0)

    y1 = conv(w1_ref, x_ref[0], b1_ref)      # branch1: 1x1 on x
    y2 = conv(w3_ref, t3_ref[0], b3_ref)     # branch2: 3x3 via im2col taps
    y3 = conv(w5_ref, t5_ref[0], b5_ref)     # branch3: 5x5 via im2col taps
    y4 = conv(wp_ref, pool_ref[0], bp_ref)   # branch4: 1x1 on maxpooled x
    o_ref[0] = jnp.concatenate([y1, y2, y3, y4], axis=0).astype(o_ref.dtype)


# ---------------------------------------------------------------------------
# pallas_call wrappers
# ---------------------------------------------------------------------------
def _compiler_params():
    return pltpu.CompilerParams(
        dimension_semantics=("parallel", "parallel"),
        vmem_limit_bytes=_VMEM_LIMIT_BYTES)


def _reduce1x1(x_ncm, w, b, tm):
    """relu(w @ x + b): x (N, Cin, HWp), w (Co, Cin), b (Co,1) -> (N, Co, HWp)."""
    n, cin, hwp = x_ncm.shape
    co = w.shape[0]
    return pl.pallas_call(
        _reduce1x1_kernel,
        out_shape=jax.ShapeDtypeStruct((n, co, hwp), jnp.float32),
        grid=(n, hwp // tm),
        in_specs=[
            pl.BlockSpec((1, cin, tm), lambda b_, i: (b_, 0, i)),
            pl.BlockSpec((co, cin), lambda b_, i: (0, 0)),   # copied once
            pl.BlockSpec((co, 1), lambda b_, i: (0, 0)),
        ],
        out_specs=pl.BlockSpec((1, co, tm), lambda b_, i: (b_, 0, i)),
        compiler_params=_compiler_params(),
    )(x_ncm, w, b)


def _inception_out(x_ncm, pooled, t3, t5, w1, w3, w5, wp, b1, b3, b5, bp, tm):
    """Fused stage-2 call: all four branches -> (N, C_total, HWp) slab."""
    n, cin, hwp = x_ncm.shape
    k3r = t3.shape[1]
    k5r = t5.shape[1]
    c1, c3, c5, cp = w1.shape[0], w3.shape[0], w5.shape[0], wp.shape[0]
    c_total = c1 + c3 + c5 + cp
    return pl.pallas_call(
        _inception_out_kernel,
        out_shape=jax.ShapeDtypeStruct((n, c_total, hwp), jnp.float32),
        grid=(n, hwp // tm),
        in_specs=[
            pl.BlockSpec((1, cin, tm), lambda b_, i: (b_, 0, i)),
            pl.BlockSpec((1, cin, tm), lambda b_, i: (b_, 0, i)),
            pl.BlockSpec((1, k3r, tm), lambda b_, i: (b_, 0, i)),
            pl.BlockSpec((1, k5r, tm), lambda b_, i: (b_, 0, i)),
            pl.BlockSpec((c1, cin), lambda b_, i: (0, 0)),
            pl.BlockSpec((c3, k3r), lambda b_, i: (0, 0)),
            pl.BlockSpec((c5, k5r), lambda b_, i: (0, 0)),
            pl.BlockSpec((cp, cin), lambda b_, i: (0, 0)),
            pl.BlockSpec((c1, 1), lambda b_, i: (0, 0)),
            pl.BlockSpec((c3, 1), lambda b_, i: (0, 0)),
            pl.BlockSpec((c5, 1), lambda b_, i: (0, 0)),
            pl.BlockSpec((cp, 1), lambda b_, i: (0, 0)),
        ],
        out_specs=pl.BlockSpec((1, c_total, tm), lambda b_, i: (b_, 0, i)),
        compiler_params=_compiler_params(),
    )(x_ncm, pooled, t3, t5, w1, w3, w5, wp, b1, b3, b5, bp)


# ---------------------------------------------------------------------------
# Layout helpers (traced by XLA, outside the kernels)
# ---------------------------------------------------------------------------
def _round_up(x, m):
    return (x + m - 1) // m * m


def _choose_tile(hwp, bytes_per_col, budget=_VMEM_TILE_BUDGET):
    """Largest lane tile dividing HWp that fits the VMEM budget."""
    for tm in (2048, 1024, 512, 256, 128):
        if hwp % tm == 0 and tm * bytes_per_col <= budget:
            return tm
    return 128


def _pad_last(a, target):
    cur = a.shape[-1]
    if cur == target:
        return a
    pad = [(0, 0)] * (a.ndim - 1) + [(0, target - cur)]
    return jnp.pad(a, pad)


def _pack_w(w):
    """Torch-layout (Cout, Cin, K, K) -> im2col-packed (Cout, K*K*Cin)."""
    co, ci, k, _ = w.shape
    return jnp.transpose(w, (0, 2, 3, 1)).reshape(co, k * k * ci)


# TODO(synk): at production channel counts, replace this HBM im2col with
# windowed (halo) in-kernel access to the padded input to avoid the K^2
# read amplification, and feed bf16 MXU inputs on v6e/v7x.
def _im2col(r_flat, n, h, w, k, hwp):
    """(N, C, H*W) -> (N, K*K*C, HWp) im2col taps (zero spatial pad)."""
    c = r_flat.shape[1]
    p = (k - 1) // 2
    rp = jnp.pad(r_flat.reshape(n, c, h, w), ((0, 0), (0, 0), (p, p), (p, p)))
    cols = [rp[:, :, dy:dy + h, dx:dx + w].reshape(n, c, h * w)
            for dy in range(k) for dx in range(k)]
    return _pad_last(jnp.concatenate(cols, axis=1), hwp)


# ---------------------------------------------------------------------------
# Parameter init (PyTorch conv layout: w (Cout, Cin, K, K), b (Cout,))
# ---------------------------------------------------------------------------
def _init_conv(key, k, cin, cout):
    kw, kb = jax.random.split(key)
    fan_in = k * k * cin
    w = jax.random.normal(kw, (cout, cin, k, k), jnp.float32) / jnp.sqrt(
        jnp.float32(fan_in))
    b = 0.01 * jax.random.normal(kb, (cout,), jnp.float32)
    return w, b


def init_inception_params(key, in_channels, out_1x1, red_3x3, out_3x3,
                          red_5x5, out_5x5, out_pool):
    ks = jax.random.split(key, 6)
    return {
        "b1": _init_conv(ks[0], 1, in_channels, out_1x1),
        "b2a": _init_conv(ks[1], 1, in_channels, red_3x3),
        "b2b": _init_conv(ks[2], 3, red_3x3, out_3x3),
        "b3a": _init_conv(ks[3], 1, in_channels, red_5x5),
        "b3b": _init_conv(ks[4], 5, red_5x5, out_5x5),
        "b4": _init_conv(ks[5], 1, in_channels, out_pool),
    }


# ---------------------------------------------------------------------------
# Full Inception forward (NCHW in / NCHW out)
# ---------------------------------------------------------------------------
@jax.jit
def inception_forward(x_nchw, params):
    n, cin, h, w = x_nchw.shape
    hw = h * w
    hwp = _round_up(hw, 128)

    xf = x_nchw.astype(jnp.float32)
    x_ncm = _pad_last(xf.reshape(n, cin, hw), hwp)   # (N, Cin, HWp), free view

    w1, b1v = params["b1"]      # 1x1 -> out_1x1
    w2a, b2av = params["b2a"]   # 1x1 -> red_3x3
    w2b, b2bv = params["b2b"]   # 3x3 -> out_3x3
    w3a, b3av = params["b3a"]   # 1x1 -> red_5x5
    w3b, b3bv = params["b3b"]   # 5x5 -> out_5x5
    w4, b4v = params["b4"]      # 1x1 (after pool) -> out_pool

    red_3x3, red_5x5 = w2a.shape[0], w3a.shape[0]
    k3, k5 = w2b.shape[2], w3b.shape[2]
    c_total = w1.shape[0] + w2b.shape[0] + w3b.shape[0] + w4.shape[0]

    # Lane-tile size shared by both calls (VMEM-budgeted, f32, double-buffered).
    rows = 2 * cin + k3 * k3 * red_3x3 + k5 * k5 * red_5x5 + c_total
    tm = _choose_tile(hwp, 4 * 2 * rows)

    # ---- stage 1: fused reduction 1x1 convs (red_3x3 + red_5x5), bias+ReLU --
    w_red = jnp.concatenate([_pack_w(w2a), _pack_w(w3a)], axis=0)
    b_red = jnp.concatenate([b2av, b3av]).reshape(-1, 1)
    y_red = _reduce1x1(x_ncm, w_red, b_red, tm)      # (N, red3+red5, HWp)

    r2 = y_red[:, :red_3x3, :hw]
    r3 = y_red[:, red_3x3:, :hw]

    # im2col taps for the 3x3 / 5x5 convs (XLA, outside the kernels).
    taps3 = _im2col(r2, n, h, w, k3, hwp)            # (N, 9*red3,  HWp)
    taps5 = _im2col(r3, n, h, w, k5, hwp)            # (N, 25*red5, HWp)

    # branch-4 3x3 max-pool (stride 1, pad 1; -inf pad matches torch MaxPool2d)
    pooled = lax.reduce_window(
        xf, -jnp.inf, lax.max,
        window_dimensions=(1, 1, 3, 3), window_strides=(1, 1, 1, 1),
        padding=[(0, 0), (0, 0), (1, 1), (1, 1)])
    pooled = _pad_last(pooled.reshape(n, cin, hw), hwp)

    # ---- stage 2: all four branches -> one (N, C_total, HWp) slab -----------
    out = _inception_out(
        x_ncm, pooled, taps3, taps5,
        _pack_w(w1), _pack_w(w2b), _pack_w(w3b), _pack_w(w4),
        b1v.reshape(-1, 1), b2bv.reshape(-1, 1),
        b3bv.reshape(-1, 1), b4v.reshape(-1, 1), tm)

    return out[:, :, :hw].reshape(n, c_total, h, w)


# ---------------------------------------------------------------------------
# Pure-JAX reference (sanity check only)
# ---------------------------------------------------------------------------
def _ref_conv_relu(x_nchw, w, b):
    co, k = w.shape[0], w.shape[2]
    p = (k - 1) // 2
    y = lax.conv_general_dilated(
        x_nchw, jnp.transpose(w, (2, 3, 1, 0)),
        window_strides=(1, 1), padding=[(p, p), (p, p)],
        dimension_numbers=("NCHW", "HWIO", "NCHW"))
    return jax.nn.relu(y + b.reshape(1, co, 1, 1))


def ref_forward(x_nchw, params):
    b1 = _ref_conv_relu(x_nchw, *params["b1"])
    r2 = _ref_conv_relu(x_nchw, *params["b2a"])
    b2 = _ref_conv_relu(r2, *params["b2b"])
    r3 = _ref_conv_relu(x_nchw, *params["b3a"])
    b3 = _ref_conv_relu(r3, *params["b3b"])
    pooled = lax.reduce_window(
        x_nchw, -jnp.inf, lax.max,
        window_dimensions=(1, 1, 3, 3), window_strides=(1, 1, 1, 1),
        padding=[(0, 0), (0, 0), (1, 1), (1, 1)])
    b4 = _ref_conv_relu(pooled, *params["b4"])
    return jnp.concatenate([b1, b2, b3, b4], axis=1)


# ---------------------------------------------------------------------------
if __name__ == "__main__":
    key = jax.random.PRNGKey(0)
    k_x, k_p = jax.random.split(key)

    # Inception(in_channels=4, out_1x1=8, red_3x3=4, out_3x3=8,
    #           red_5x5=4, out_5x5=8, out_pool=8)
    in_channels, out_1x1, red_3x3, out_3x3, red_5x5, out_5x5, out_pool = \
        4, 8, 4, 8, 4, 8, 8
    N, H, W = 2, 16, 16

    x = jax.random.normal(k_x, (N, in_channels, H, W), jnp.float32)
    params = init_inception_params(k_p, in_channels, out_1x1, red_3x3,
                                   out_3x3, red_5x5, out_5x5, out_pool)

    out = jax.block_until_ready(inception_forward(x, params))

    expected_channels = out_1x1 + out_3x3 + out_5x5 + out_pool
    assert out.shape == (N, expected_channels, H, W), out.shape
    assert bool(jnp.all(jnp.isfinite(out)))

    # Loose check vs. pure-JAX reference (default MXU precision for f32 dots).
    ref = jax.block_until_ready(ref_forward(x, params))
    assert jnp.allclose(out, ref, atol=1e-1, rtol=1e-1)

    print("KERNEL_OK")
</pallas_src>

<mosaic_0001>
module attributes {stable_mosaic.version = 11 : i64} {
  func.func @_reduce1x1_kernel(%arg0: i32, %arg1: i32, %arg2: memref<1x4x256xf32, #tpu.memory_space<vmem>>, %arg3: memref<8x4xf32, #tpu.memory_space<vmem>>, %arg4: memref<8x1xf32, #tpu.memory_space<vmem>>, %arg5: memref<1x8x256xf32, #tpu.memory_space<vmem>>) attributes {dimension_semantics = [#tpu.dimension_semantics<parallel>, #tpu.dimension_semantics<parallel>], iteration_bounds = array<i64: 2, 1>, scalar_prefetch = 0 : i64, scratch_operands = 0 : i64, tpu.core_type = #tpu.core_type<tc>, window_params = [{transform_indices = @transform_0, window_bounds = array<i64: 1, 4, 256>}, {pipeline_mode = #tpu.pipeline_mode<synchronous>, transform_indices = @transform_1, window_bounds = array<i64: 8, 4>}, {pipeline_mode = #tpu.pipeline_mode<synchronous>, transform_indices = @transform_2, window_bounds = array<i64: 8, 1>}, {transform_indices = @transform_3, window_bounds = array<i64: 1, 8, 256>}]} {
    %c0 = arith.constant 0 : index
    %c0_0 = arith.constant 0 : index
    %0 = vector.load %arg3[%c0, %c0_0] : memref<8x4xf32, #tpu.memory_space<vmem>>, vector<8x4xf32>
    %c0_1 = arith.constant 0 : index
    %c0_2 = arith.constant 0 : index
    %c0_3 = arith.constant 0 : index
    %1 = vector.load %arg2[%c0_1, %c0_2, %c0_3] : memref<1x4x256xf32, #tpu.memory_space<vmem>>, vector<1x4x256xf32>
    %2 = vector.shape_cast %1 : vector<1x4x256xf32> to vector<4x256xf32>
    %cst = arith.constant dense<0.000000e+00> : vector<8x256xf32>
    %3 = tpu.matmul %0, %2, %cst {dimension_numbers = #tpu.dot_dimension_numbers<[1], [0], [0], [1], [0, 0, 1, 1], [], []>} : vector<8x4xf32>, vector<4x256xf32>, vector<8x256xf32> -> vector<8x256xf32>
    %c0_4 = arith.constant 0 : index
    %c0_5 = arith.constant 0 : index
    %4 = vector.load %arg4[%c0_4, %c0_5] : memref<8x1xf32, #tpu.memory_space<vmem>>, vector<8x1xf32>
    %5 = vector.broadcast %4 : vector<8x1xf32> to vector<8x256xf32>
    %6 = arith.addf %3, %5 : vector<8x256xf32>
    %cst_6 = arith.constant 0.000000e+00 : f32
    %7 = vector.broadcast %cst_6 : f32 to vector<8x256xf32>
    %8 = arith.maximumf %6, %7 : vector<8x256xf32>
    %c0_7 = arith.constant 0 : index
    %c0_8 = arith.constant 0 : index
    %c0_9 = arith.constant 0 : index
    %9 = vector.load %arg5[%c0_7, %c0_8, %c0_9] : memref<1x8x256xf32, #tpu.memory_space<vmem>>, vector<1x8x256xf32>
    %10 = vector.shape_cast %9 : vector<1x8x256xf32> to vector<8x256xf32>
    %11 = vector.shape_cast %8 : vector<8x256xf32> to vector<1x8x256xf32>
    tpu.vector_store %arg5[%c0_7, %c0_8, %c0_9], %11 {strides = array<i32>} : memref<1x8x256xf32, #tpu.memory_space<vmem>>, vector<1x8x256xf32>,
    return
  }
  func.func @transform_0(%arg0: i32, %arg1: i32) -> (i32, i32, i32) {
    %c0_i32 = arith.constant 0 : i32
    %c0_i32_0 = arith.constant 0 : i32
    return %arg0, %c0_i32, %arg1 : i32, i32, i32
  }
  func.func @transform_1(%arg0: i32, %arg1: i32) -> (i32, i32) {
    %c0_i32 = arith.constant 0 : i32
    %c0_i32_0 = arith.constant 0 : i32
    %c0_i32_1 = arith.constant 0 : i32
    return %c0_i32, %c0_i32_0 : i32, i32
  }
  func.func @transform_2(%arg0: i32, %arg1: i32) -> (i32, i32) {
    %c0_i32 = arith.constant 0 : i32
    %c0_i32_0 = arith.constant 0 : i32
    %c0_i32_1 = arith.constant 0 : i32
    return %c0_i32, %c0_i32_0 : i32, i32
  }
  func.func @transform_3(%arg0: i32, %arg1: i32) -> (i32, i32, i32) {
    %c0_i32 = arith.constant 0 : i32
    %c0_i32_0 = arith.constant 0 : i32
    return %arg0, %c0_i32, %arg1 : i32, i32, i32
  }
}

module attributes {stable_mosaic.version = 11 : i64} {
  func.func @_inception_out_kernel(%arg0: i32, %arg1: i32, %arg2: memref<1x4x256xf32, #tpu.memory_space<vmem>>, %arg3: memref<1x4x256xf32, #tpu.memory_space<vmem>>, %arg4: memref<1x36x256xf32, #tpu.memory_space<vmem>>, %arg5: memref<1x100x256xf32, #tpu.memory_space<vmem>>, %arg6: memref<8x4xf32, #tpu.memory_space<vmem>>, %arg7: memref<8x36xf32, #tpu.memory_space<vmem>>, %arg8: memref<8x100xf32, #tpu.memory_space<vmem>>, %arg9: memref<8x4xf32, #tpu.memory_space<vmem>>, %arg10: memref<8x1xf32, #tpu.memory_space<vmem>>, %arg11: memref<8x1xf32, #tpu.memory_space<vmem>>, %arg12: memref<8x1xf32, #tpu.memory_space<vmem>>, %arg13: memref<8x1xf32, #tpu.memory_space<vmem>>, %arg14: memref<1x32x256xf32, #tpu.memory_space<vmem>>) attributes {dimension_semantics = [#tpu.dimension_semantics<parallel>, #tpu.dimension_semantics<parallel>], iteration_bounds = array<i64: 2, 1>, scalar_prefetch = 0 : i64, scratch_operands = 0 : i64, tpu.core_type = #tpu.core_type<tc>, window_params = [{transform_indices = @transform_0, window_bounds = array<i64: 1, 4, 256>}, {transform_indices = @transform_1, window_bounds = array<i64: 1, 4, 256>}, {transform_indices = @transform_2, window_bounds = array<i64: 1, 36, 256>}, {transform_indices = @transform_3, window_bounds = array<i64: 1, 100, 256>}, {pipeline_mode = #tpu.pipeline_mode<synchronous>, transform_indices = @transform_4, window_bounds = array<i64: 8, 4>}, {pipeline_mode = #tpu.pipeline_mode<synchronous>, transform_indices = @transform_5, window_bounds = array<i64: 8, 36>}, {pipeline_mode = #tpu.pipeline_mode<synchronous>, transform_indices = @transform_6, window_bounds = array<i64: 8, 100>}, {pipeline_mode = #tpu.pipeline_mode<synchronous>, transform_indices = @transform_7, window_bounds = array<i64: 8, 4>}, {pipeline_mode = #tpu.pipeline_mode<synchronous>, transform_indices = @transform_8, window_bounds = array<i64: 8, 1>}, {pipeline_mode = #tpu.pipeline_mode<synchronous>, transform_indices = @transform_9, window_bounds = array<i64: 8, 1>}, {pipeline_mode = #tpu.pipeline_mode<synchronous>, transform_indices = @transform_10, window_bounds = array<i64: 8, 1>}, {pipeline_mode = #tpu.pipeline_mode<synchronous>, transform_indices = @transform_11, window_bounds = array<i64: 8, 1>}, {transform_indices = @transform_12, window_bounds = array<i64: 1, 32, 256>}]} {
    %c0 = arith.constant 0 : index
    %c0_0 = arith.constant 0 : index
    %c0_1 = arith.constant 0 : index
    %0 = vector.load %arg2[%c0, %c0_0, %c0_1] : memref<1x4x256xf32, #tpu.memory_space<vmem>>, vector<1x4x256xf32>
    %1 = vector.shape_cast %0 : vector<1x4x256xf32> to vector<4x256xf32>
    %c0_2 = arith.constant 0 : index
    %c0_3 = arith.constant 0 : index
    %2 = vector.load %arg6[%c0_2, %c0_3] : memref<8x4xf32, #tpu.memory_space<vmem>>, vector<8x4xf32>
    %cst = arith.constant dense<0.000000e+00> : vector<8x256xf32>
    %3 = tpu.matmul %2, %1, %cst {dimension_numbers = #tpu.dot_dimension_numbers<[1], [0], [0], [1], [0, 0, 1, 1], [], []>} : vector<8x4xf32>, vector<4x256xf32>, vector<8x256xf32> -> vector<8x256xf32>
    %c0_4 = arith.constant 0 : index
    %c0_5 = arith.constant 0 : index
    %4 = vector.load %arg10[%c0_4, %c0_5] : memref<8x1xf32, #tpu.memory_space<vmem>>, vector<8x1xf32>
    %5 = vector.broadcast %4 : vector<8x1xf32> to vector<8x256xf32>
    %6 = arith.addf %3, %5 : vector<8x256xf32>
    %cst_6 = arith.constant 0.000000e+00 : f32
    %7 = vector.broadcast %cst_6 : f32 to vector<8x256xf32>
    %8 = arith.maximumf %6, %7 : vector<8x256xf32>
    %c0_7 = arith.constant 0 : index
    %c0_8 = arith.constant 0 : index
    %c0_9 = arith.constant 0 : index
    %9 = vector.load %arg4[%c0_7, %c0_8, %c0_9] : memref<1x36x256xf32, #tpu.memory_space<vmem>>, vector<1x36x256xf32>
    %10 = vector.shape_cast %9 : vector<1x36x256xf32> to vector<36x256xf32>
    %c0_10 = arith.constant 0 : index
    %c0_11 = arith.constant 0 : index
    %11 = vector.load %arg7[%c0_10, %c0_11] : memref<8x36xf32, #tpu.memory_space<vmem>>, vector<8x36xf32>
    %cst_12 = arith.constant dense<0.000000e+00> : vector<8x256xf32>
    %12 = tpu.matmul %11, %10, %cst_12 {dimension_numbers = #tpu.dot_dimension_numbers<[1], [0], [0], [1], [0, 0, 1, 1], [], []>} : vector<8x36xf32>, vector<36x256xf32>, vector<8x256xf32> -> vector<8x256xf32>
    %c0_13 = arith.constant 0 : index
    %c0_14 = arith.constant 0 : index
    %13 = vector.load %arg11[%c0_13, %c0_14] : memref<8x1xf32, #tpu.memory_space<vmem>>, vector<8x1xf32>
    %14 = vector.broadcast %13 : vector<8x1xf32> to vector<8x256xf32>
    %15 = arith.addf %12, %14 : vector<8x256xf32>
    %cst_15 = arith.constant 0.000000e+00 : f32
    %16 = vector.broadcast %cst_15 : f32 to vector<8x256xf32>
    %17 = arith.maximumf %15, %16 : vector<8x256xf32>
    %c0_16 = arith.constant 0 : index
    %c0_17 = arith.constant 0 : index
    %c0_18 = arith.constant 0 : index
    %18 = vector.load %arg5[%c0_16, %c0_17, %c0_18] : memref<1x100x256xf32, #tpu.memory_space<vmem>>, vector<1x100x256xf32>
    %19 = vector.shape_cast %18 : vector<1x100x256xf32> to vector<100x256xf32>
    %c0_19 = arith.constant 0 : index
    %c0_20 = arith.constant 0 : index
    %20 = vector.load %arg8[%c0_19, %c0_20] : memref<8x100xf32, #tpu.memory_space<vmem>>, vector<8x100xf32>
    %cst_21 = arith.constant dense<0.000000e+00> : vector<8x256xf32>
    %21 = tpu.matmul %20, %19, %cst_21 {dimension_numbers = #tpu.dot_dimension_numbers<[1], [0], [0], [1], [0, 0, 1, 1], [], []>} : vector<8x100xf32>, vector<100x256xf32>, vector<8x256xf32> -> vector<8x256xf32>
    %c0_22 = arith.constant 0 : index
    %c0_23 = arith.constant 0 : index
    %22 = vector.load %arg12[%c0_22, %c0_23] : memref<8x1xf32, #tpu.memory_space<vmem>>, vector<8x1xf32>
    %23 = vector.broadcast %22 : vector<8x1xf32> to vector<8x256xf32>
    %24 = arith.addf %21, %23 : vector<8x256xf32>
    %cst_24 = arith.constant 0.000000e+00 : f32
    %25 = vector.broadcast %cst_24 : f32 to vector<8x256xf32>
    %26 = arith.maximumf %24, %25 : vector<8x256xf32>
    %c0_25 = arith.constant 0 : index
    %c0_26 = arith.constant 0 : index
    %c0_27 = arith.constant 0 : index
    %27 = vector.load %arg3[%c0_25, %c0_26, %c0_27] : memref<1x4x256xf32, #tpu.memory_space<vmem>>, vector<1x4x256xf32>
    %28 = vector.shape_cast %27 : vector<1x4x256xf32> to vector<4x256xf32>
    %c0_28 = arith.constant 0 : index
    %c0_29 = arith.constant 0 : index
    %29 = vector.load %arg9[%c0_28, %c0_29] : memref<8x4xf32, #tpu.memory_space<vmem>>, vector<8x4xf32>
    %cst_30 = arith.constant dense<0.000000e+00> : vector<8x256xf32>
    %30 = tpu.matmul %29, %28, %cst_30 {dimension_numbers = #tpu.dot_dimension_numbers<[1], [0], [0], [1], [0, 0, 1, 1], [], []>} : vector<8x4xf32>, vector<4x256xf32>, vector<8x256xf32> -> vector<8x256xf32>
    %c0_31 = arith.constant 0 : index
    %c0_32 = arith.constant 0 : index
    %31 = vector.load %arg13[%c0_31, %c0_32] : memref<8x1xf32, #tpu.memory_space<vmem>>, vector<8x1xf32>
    %32 = vector.broadcast %31 : vector<8x1xf32> to vector<8x256xf32>
    %33 = arith.addf %30, %32 : vector<8x256xf32>
    %cst_33 = arith.constant 0.000000e+00 : f32
    %34 = vector.broadcast %cst_33 : f32 to vector<8x256xf32>
    %35 = arith.maximumf %33, %34 : vector<8x256xf32>
    %36 = tpu.concatenate %8, %17, %26, %35 in 0 : vector<8x256xf32>, vector<8x256xf32>, vector<8x256xf32>, vector<8x256xf32> -> vector<32x256xf32>
    %c0_34 = arith.constant 0 : index
    %c0_35 = arith.constant 0 : index
    %c0_36 = arith.constant 0 : index
    %37 = vector.load %arg14[%c0_34, %c0_35, %c0_36] : memref<1x32x256xf32, #tpu.memory_space<vmem>>, vector<1x32x256xf32>
    %38 = vector.shape_cast %37 : vector<1x32x256xf32> to vector<32x256xf32>
    %39 = vector.shape_cast %36 : vector<32x256xf32> to vector<1x32x256xf32>
    tpu.vector_store %arg14[%c0_34, %c0_35, %c0_36], %39 {strides = array<i32>} : memref<1x32x256xf32, #tpu.memory_space<vmem>>, vector<1x32x256xf32>,
    return
  }
  func.func @transform_0(%arg0: i32, %arg1: i32) -> (i32, i32, i32) {
    %c0_i32 = arith.constant 0 : i32
    %c0_i32_0 = arith.constant 0 : i32
    return %arg0, %c0_i32, %arg1 : i32, i32, i32
  }
  func.func @transform_1(%arg0: i32, %arg1: i32) -> (i32, i32, i32) {
    %c0_i32 = arith.constant 0 : i32
    %c0_i32_0 = arith.constant 0 : i32
    return %arg0, %c0_i32, %arg1 : i32, i32, i32
  }
  func.func @transform_2(%arg0: i32, %arg1: i32) -> (i32, i32, i32) {
    %c0_i32 = arith.constant 0 : i32
    %c0_i32_0 = arith.constant 0 : i32
    return %arg0, %c0_i32, %arg1 : i32, i32, i32
  }
  func.func @transform_3(%arg0: i32, %arg1: i32) -> (i32, i32, i32) {
    %c0_i32 = arith.constant 0 : i32
    %c0_i32_0 = arith.constant 0 : i32
    return %arg0, %c0_i32, %arg1 : i32, i32, i32
  }
  func.func @transform_4(%arg0: i32, %arg1: i32) -> (i32, i32) {
    %c0_i32 = arith.constant 0 : i32
    %c0_i32_0 = arith.constant 0 : i32
    %c0_i32_1 = arith.constant 0 : i32
    return %c0_i32, %c0_i32_0 : i32, i32
  }
  func.func @transform_5(%arg0: i32, %arg1: i32) -> (i32, i32) {
    %c0_i32 = arith.constant 0 : i32
    %c0_i32_0 = arith.constant 0 : i32
    %c0_i32_1 = arith.constant 0 : i32
    return %c0_i32, %c0_i32_0 : i32, i32
  }
  func.func @transform_6(%arg0: i32, %arg1: i32) -> (i32, i32) {
    %c0_i32 = arith.constant 0 : i32
    %c0_i32_0 = arith.constant 0 : i32
    %c0_i32_1 = arith.constant 0 : i32
    return %c0_i32, %c0_i32_0 : i32, i32
  }
  func.func @transform_7(%arg0: i32, %arg1: i32) -> (i32, i32) {
    %c0_i32 = arith.constant 0 : i32
    %c0_i32_0 = arith.constant 0 : i32
    %c0_i32_1 = arith.constant 0 : i32
    return %c0_i32, %c0_i32_0 : i32, i32
  }
  func.func @transform_8(%arg0: i32, %arg1: i32) -> (i32, i32) {
    %c0_i32 = arith.constant 0 : i32
    %c0_i32_0 = arith.constant 0 : i32
    %c0_i32_1 = arith.constant 0 : i32
    return %c0_i32, %c0_i32_0 : i32, i32
  }
  func.func @transform_9(%arg0: i32, %arg1: i32) -> (i32, i32) {
    %c0_i32 = arith.constant 0 : i32
    %c0_i32_0 = arith.constant 0 : i32
    %c0_i32_1 = arith.constant 0 : i32
    return %c0_i32, %c0_i32_0 : i32, i32
  }
  func.func @transform_10(%arg0: i32, %arg1: i32) -> (i32, i32) {
    %c0_i32 = arith.constant 0 : i32
    %c0_i32_0 = arith.constant 0 : i32
    %c0_i32_1 = arith.constant 0 : i32
    return %c0_i32, %c0_i32_0 : i32, i32
  }
  func.func @transform_11(%arg0: i32, %arg1: i32) -> (i32, i32) {
    %c0_i32 = arith.constant 0 : i32
    %c0_i32_0 = arith.constant 0 : i32
    %c0_i32_1 = arith.constant 0 : i32
    return %c0_i32, %c0_i32_0 : i32, i32
  }
  func.func @transform_12(%arg0: i32, %arg1: i32) -> (i32, i32, i32) {
    %c0_i32 = arith.constant 0 : i32
    %c0_i32_0 = arith.constant 0 : i32
    return %arg0, %c0_i32, %arg1 : i32, i32, i32
  }
}

</mosaic_0001>

<llo_original>
// kernel: inception_forward.2
$region0: #{inception_forward.2}
  #allocation0 [shape = 'u32[]', space=smem, size = 0x4, offset = 0x4, fixed_abs, tag = 'smem constant byte address 0x4 - core index']
  #allocation1 [shape = 'u32[72,128]{1,0:T(1,128)}', space=vmem, size = 0x9000, scoped, tag = 'internal scratch']
  %s0 = inlined_call_operand.vmem [shape: f32[2,4,256], index: 0, kind: input, shape index: {}]
  %s1 = inlined_call_operand.vmem [shape: f32[8,4], index: 1, kind: input, shape index: {}]
  %s2 = inlined_call_operand.vmem [shape: f32[8,1], index: 2, kind: input, shape index: {}]
  %s3 = inlined_call_operand.vmem [shape: f32[2,8,256], index: 3, kind: output, shape index: {}]
  %s4 = sld [smem:[#allocation0]]
  $region45: #{inception_forward.2} parent=0
    _
  %s6 = ssub.s32 1, %s4
  %s7 = scalar_select 0, %s6, %s4
  loop: start=0, step=1, limit=4
  $region2: #{inception_forward.2} parent=0 // loop_pre_header
    _
  $region3: #{inception_forward.2} parent=0 // loop_header
    %s9 = sphi 0, %s13
    %p10 = scmp.ge.s32.totalorder %s9, 4
    %s16 = sphi 0, %s28
    %s17 = sphi 0, %s24
    %s18 = sphi 0, %s16
    %s19 = sphi 0, %s17
    %s20 = sphi 0, %s18
    %s21 = sphi 0, %s19
    %s33 = sphi 0, %s35
    %s36 = sphi 0, %s33
    %s37 = sphi 0, %s36
    %s53 = sphi 0, %s37
    %s57 = sphi 0, %s57
    %s59 = sphi 0, %s57
    %s60 = sphi 0, %s59
    %s74 = sphi 0, %s60
    %s78 = sphi 0, %s78
    %s80 = sphi 0, %s78
    %s81 = sphi 0, %s80
    %s95 = sphi 0, %s81
    %s103 = sphi 0, %s105
    %s106 = sphi 0, %s103
    %s107 = sphi 0, %s106
    %s123 = sphi 0, %s107
  $region4: #{inception_forward.2} parent=0 // loop_header_branch
    %12 = sbr.rel (%p10) target = $region8
  $region5: #{inception_forward.2} parent=0 // loop_body
    %s14 = ssub.s32 %s9, 1
    %s15 = ssub.s32 %s9, 2
    %s22 = sadd.s32 1, %s17
    %p23 = scmp.ge.s32.totalorder %s22, 1
    %s24 = scalar_select %p23, 0, %s22
    %s25 = sadd.s32 1, %s16
    %s26 = scalar_select %p23, %s25, %s16
    %p27 = scmp.ge.s32.totalorder %s26, 2
    %s28 = scalar_select %p27, 0, %s26
    %s29 = ssub.s32 %s16, %s28
    %s30 = ssub.s32 %s17, %s24
    %s31 = sor.u32 %s29, %s30
    %p32 = scmp.eq.s32.totalorder %s31, 0
    %s34 = sadd.s32 %s33, 1
    %s35 = scalar_select %p32, %s33, %s34
    %p38 = pneg %p32
    %p39 = scmp.eq.s32.totalorder %s9, 1
    %p40 = por %p38, %p39
    %p41 = scmp.ne.s32.totalorder %s33, %s36
    %p42 = scmp.eq.s32.totalorder %s9, 0
    %p43 = por %p41, %p42
    %p44 = scmp.ne.s32.totalorder %s33, %s36
    %p45 = scmp.eq.s32.totalorder %s14, 1
    %p46 = por %p44, %p45
    %p47 = scmp.ne.s32.totalorder %s36, %s37
    %p48 = scmp.eq.s32.totalorder %s14, 0
    %p49 = por %p47, %p48
    %p50 = scmp.ne.s32.totalorder %s36, %s37
    %p51 = scmp.eq.s32.totalorder %s15, 1
    %p52 = por %p50, %p51
    %p54 = scmp.ne.s32.totalorder %s37, %s53
    %p55 = scmp.eq.s32.totalorder %s15, 0
    %p56 = por %p54, %p55
    %s58 = sadd.s32 %s57, 1
    %p61 = scmp.eq.s32.totalorder %s9, 1
    %p62 = scmp.ne.s32.totalorder %s57, %s59
    %p63 = scmp.eq.s32.totalorder %s9, 0
    %p64 = por %p62, %p63
    %p65 = scmp.ne.s32.totalorder %s57, %s59
    %p66 = scmp.eq.s32.totalorder %s14, 1
    %p67 = por %p65, %p66
    %p68 = scmp.ne.s32.totalorder %s59, %s60
    %p69 = scmp.eq.s32.totalorder %s14, 0
    %p70 = por %p68, %p69
    %p71 = scmp.ne.s32.totalorder %s59, %s60
    %p72 = scmp.eq.s32.totalorder %s15, 1
    %p73 = por %p71, %p72
    %p75 = scmp.ne.s32.totalorder %s60, %s74
    %p76 = scmp.eq.s32.totalorder %s15, 0
    %p77 = por %p75, %p76
    %s79 = sadd.s32 %s78, 1
    %p82 = scmp.eq.s32.totalorder %s9, 1
    %p83 = scmp.ne.s32.totalorder %s78, %s80
    %p84 = scmp.eq.s32.totalorder %s9, 0
    %p85 = por %p83, %p84
    %p86 = scmp.ne.s32.totalorder %s78, %s80
    %p87 = scmp.eq.s32.totalorder %s14, 1
    %p88 = por %p86, %p87
    %p89 = scmp.ne.s32.totalorder %s80, %s81
    %p90 = scmp.eq.s32.totalorder %s14, 0
    %p91 = por %p89, %p90
    %p92 = scmp.ne.s32.totalorder %s80, %s81
    %p93 = scmp.eq.s32.totalorder %s15, 1
    %p94 = por %p92, %p93
    %p96 = scmp.ne.s32.totalorder %s81, %s95
    %p97 = scmp.eq.s32.totalorder %s15, 0
    %p98 = por %p96, %p97
    %s99 = ssub.s32 %s16, %s28
    %s100 = ssub.s32 %s17, %s24
    %s101 = sor.u32 %s99, %s100
    %p102 = scmp.eq.s32.totalorder %s101, 0
    %s104 = sadd.s32 %s103, 1
    %s105 = scalar_select %p102, %s103, %s104
    %p108 = pneg %p102
    %p109 = scmp.eq.s32.totalorder %s9, 1
    %p110 = por %p108, %p109
    %p111 = scmp.ne.s32.totalorder %s103, %s106
    %p112 = scmp.eq.s32.totalorder %s9, 0
    %p113 = por %p111, %p112
    %p114 = scmp.ne.s32.totalorder %s103, %s106
    %p115 = scmp.eq.s32.totalorder %s14, 1
    %p116 = por %p114, %p115
    %p117 = scmp.ne.s32.totalorder %s106, %s107
    %p118 = scmp.eq.s32.totalorder %s14, 0
    %p119 = por %p117, %p118
    %p120 = scmp.ne.s32.totalorder %s106, %s107
    %p121 = scmp.eq.s32.totalorder %s15, 1
    %p122 = por %p120, %p121
    %p124 = scmp.ne.s32.totalorder %s107, %s123
    %p125 = scmp.eq.s32.totalorder %s15, 0
    %p126 = por %p124, %p125
    %p127 = scmp.le.s32.totalorder 1, %s9
    %p128 = scmp.lt.s32.totalorder %s9, 3
    %p129 = pnand %p127, %p128
    %p130 = pneg %p129
    // Predicated region
    $region9: #{inception_forward.2} parent=5 // pred_check
      _
    $region10: #{inception_forward.2} parent=5 // pred_check_branch
      %132 = sbr.rel (%p129) target = $region12
    $region11: #{inception_forward.2} parent=5 // pred_region
      %s133 = ssub.s32 %s9, 1
      // Predicated region
      $region13: #{inception_forward.2} parent=11 // pred_check
        %p134 = pneg %p70
      $region14: #{inception_forward.2} parent=11 // pred_check_branch
        %136 = sbr.rel (%p134) target = $region16
      $region15: #{inception_forward.2} parent=11 // pred_region
        _
      $region16: #{inception_forward.2} parent=11 // pred_fallthru
        _
      // Predicated region
      $region17: #{inception_forward.2} parent=11 // pred_check
        %p137 = pneg %p91
      $region18: #{inception_forward.2} parent=11 // pred_check_branch
        %139 = sbr.rel (%p137) target = $region20
      $region19: #{inception_forward.2} parent=11 // pred_region
        _
      $region20: #{inception_forward.2} parent=11 // pred_fallthru
        _
    $region12: #{inception_forward.2} parent=5 // pred_fallthru
      _
    %p140 = scmp.lt.s32.totalorder %s9, 2
    // Predicated region
    $region21: #{inception_forward.2} parent=5 // pred_check
      %p141 = pneg %p140
    $region22: #{inception_forward.2} parent=5 // pred_check_branch
      %143 = sbr.rel (%p141) target = $region24
    $region23: #{inception_forward.2} parent=5 // pred_region
      // Predicated region
      $region25: #{inception_forward.2} parent=23 // pred_check
        %p144 = pneg %p43
      $region26: #{inception_forward.2} parent=23 // pred_check_branch
        %146 = sbr.rel (%p144) target = $region28
      $region27: #{inception_forward.2} parent=23 // pred_region
        %s147 = smul.u32 2, %s17
        %p148 = scmp.lt.s32.totalorder %s16, 1
        %s149 = scalar_select %p148, %s16, 1
        %p150 = scmp.lt.s32.totalorder %s147, 1
        %s151 = scalar_select %p150, %s147, 1
        %s152 = smul.addr %s149, 2
        %s153 = sadd.s32 %s151, %s152
        %s154 = smul.addr %s153, 4
        %s155 = scalar_lea.vmem %s0, %s154
        %s156 = smul.u32 2, %s17
      $region28: #{inception_forward.2} parent=23 // pred_fallthru
        _
    $region24: #{inception_forward.2} parent=5 // pred_fallthru
      _
    %p157 = scmp.le.s32.totalorder 1, %s9
    %p158 = scmp.lt.s32.totalorder %s9, 3
    %p159 = pnand %p157, %p158
    %p160 = pneg %p159
    // Predicated region
    $region29: #{inception_forward.2} parent=5 // pred_check
      _
    $region30: #{inception_forward.2} parent=5 // pred_check_branch
      %162 = sbr.rel (%p159) target = $region32
    $region31: #{inception_forward.2} parent=5 // pred_region
      %s163 = ssub.s32 %s9, 1
      %s164 = smul.u32 2, %s19
      %p165 = scmp.lt.s32.totalorder %s18, 1
      %s166 = scalar_select %p165, %s18, 1
      %p167 = scmp.lt.s32.totalorder %s164, 1
      %s168 = scalar_select %p167, %s164, 1
      %s169 = smul.addr %s166, 2
      %s170 = sadd.s32 %s168, %s169
      %s171 = smul.addr %s170, 4
      %s172 = scalar_lea.vmem %s0, %s171
      %p173 = pneg %p49
      %p174 = pneg %p46
      %p175 = pneg %p70
      %p176 = pneg %p67
      %p177 = pneg %p91
      %p178 = pneg %p88
      %p179 = pneg %p119
      %p180 = pneg %p116
      %s181 = smul.u32 2, %s19
      %p182 = scmp.lt.s32.totalorder %s18, 1
      %s183 = scalar_select %p182, %s18, 1
      %p184 = scmp.lt.s32.totalorder %s181, 1
      %s185 = scalar_select %p184, %s181, 1
      %s186 = smul.addr %s183, 2
      %s187 = sadd.s32 %s185, %s186
      %s188 = smul.addr %s187, 8
      %s189 = scalar_lea.vmem %s3, %s188
      %s190 = smul.u32 2, %s19
      %p191 = scmp.lt.s32.totalorder %s18, 1
      %s192 = scalar_select %p191, %s18, 1
      %p193 = scmp.lt.s32.totalorder %s190, 1
      %s194 = scalar_select %p193, %s190, 1
      %s195 = smul.addr %s192, 2
      %s196 = sadd.s32 %s194, %s195
      %s197 = smul.addr %s196, 4
      %s198 = scalar_lea.vmem %s0, %s197
      %s199 = smul.u32 2, %s19
      %s200 = smul.u32 2, %s19
      %p201 = scmp.lt.s32.totalorder %s18, 1
      %s202 = scalar_select %p201, %s18, 1
      %p203 = scmp.lt.s32.totalorder %s200, 1
      %s204 = scalar_select %p203, %s200, 1
      %s205 = smul.addr %s202, 2
      %s206 = sadd.s32 %s204, %s205
      %s207 = smul.addr %s206, 8
      %s208 = scalar_lea.vmem %s3, %s207
      %s209 = smul.u32 2, %s19
      %v210 = vld [vmem:[%s1] sm:$0xff]
      %v211 = vld [vmem:[%s198] sm:$0xff]
      %v212 = vld [vmem:[%s2] sm:$0xff]
      %214 = vset.pattern.permute.xlu0 0
      %215 = vperm.xlu0 %214, %v212
      %v216 = vpop.permute.xlu0 %215
      %219 = vst [vmem:[#allocation1] ss:$2 sm:$0xff] %v211
      %v220 = vld.sshfl [vmem:[#allocation1] sm:$0xff pattern:$0x75316420]
      %v221 = vld.sshfl [vmem:[#allocation1 + $0x8] sm:$0xff pattern:$0x75316420]
      %vm222 = vcmask 31744
      %v224 = vsel %vm222, %v210, 0
      %vm226 = vcmask 1043456
      %v227 = vsel %vm226, %v220, 0
      %v229 = vsel %vm226, %v221, 0
      %231 = vmatpush.msra.mxu0 0.0
      %232 = vmatpush.msra.mxu0 0.0
      %233 = vmatpush.msra.mxu0 0.0
      %234 = vmatpush.msra.mxu0 0.0
      %235 = vmatpush.msra.mxu0 0.0
      %236 = vmatpush.msra.mxu0 0.0
      %237 = vmatpush.msra.mxu0 0.0
      %238 = vmatpush.msra.mxu0 0.0
      %239 = vmatpush.msra.mxu0 0.0
      %240 = vmatpush.msra.mxu0 0.0
      %241 = vmatpush.msra.mxu0 0.0
      %242 = vmatpush.msra.mxu0 0.0
      %243 = vmatpush.msra.mxu0 0.0
      %244 = vmatpush.msra.mxu0 0.0
      %245 = vmatpush.msra.mxu0 0.0
      %246 = vmatpush.msra.mxu0 %v227
      %247 = vmatmul.f32.gmra.mxu0 %v224
      %v248 = vpop.f32.mrf.mxu0
      %v249 = vadd.f32 %v216, %v248
      %250 = vdwg.mxu0
      %251 = vmatpush.msra.mxu0 0.0
      %252 = vmatpush.msra.mxu0 0.0
      %253 = vmatpush.msra.mxu0 0.0
      %254 = vmatpush.msra.mxu0 0.0
      %255 = vmatpush.msra.mxu0 0.0
      %256 = vmatpush.msra.mxu0 0.0
      %257 = vmatpush.msra.mxu0 0.0
      %258 = vmatpush.msra.mxu0 0.0
      %259 = vmatpush.msra.mxu0 0.0
      %260 = vmatpush.msra.mxu0 0.0
      %261 = vmatpush.msra.mxu0 0.0
      %262 = vmatpush.msra.mxu0 0.0
      %263 = vmatpush.msra.mxu0 0.0
      %264 = vmatpush.msra.mxu0 0.0
      %265 = vmatpush.msra.mxu0 0.0
      %266 = vmatpush.msra.mxu0 %v229
      %267 = vmatmul.f32.gmra.mxu0 %v224
      %v268 = vpop.f32.mrf.mxu0
      %v269 = vadd.f32 %v216, %v268
      %270 = vdwg.mxu0
      %v271 = vmax.f32 %v249, 0.0
      %v272 = vmax.f32 %v269, 0.0
      %273 = vst [vmem:[%s208] sm:$0xff] %v271
      %274 = vst [vmem:[%s208 + $0x8] sm:$0xff] %v272
      %s275 = smul.u32 2, %s19
      %p276 = scmp.lt.s32.totalorder %s18, 1
      %s277 = scalar_select %p276, %s18, 1
      %p278 = scmp.lt.s32.totalorder %s275, 1
      %s279 = scalar_select %p278, %s275, 1
      %s280 = smul.addr %s277, 2
      %s281 = sadd.s32 %s279, %s280
      %s282 = smul.addr %s281, 8
      %s283 = scalar_lea.vmem %s3, %s282
      // Predicated region
      $region33: #{inception_forward.2} parent=31 // pred_check
        %p284 = pneg %p116
      $region34: #{inception_forward.2} parent=31 // pred_check_branch
        %286 = sbr.rel (%p284) target = $region36
      $region35: #{inception_forward.2} parent=31 // pred_region
        %s287 = smul.u32 2, %s19
      $region36: #{inception_forward.2} parent=31 // pred_fallthru
        _
    $region32: #{inception_forward.2} parent=5 // pred_fallthru
      _
    %p288 = scmp.le.s32.totalorder 2, %s9
    // Predicated region
    $region37: #{inception_forward.2} parent=5 // pred_check
      %p289 = pneg %p288
    $region38: #{inception_forward.2} parent=5 // pred_check_branch
      %291 = sbr.rel (%p289) target = $region40
    $region39: #{inception_forward.2} parent=5 // pred_region
      %s292 = ssub.s32 %s9, 2
      // Predicated region
      $region41: #{inception_forward.2} parent=39 // pred_check
        %p293 = pneg %p122
      $region42: #{inception_forward.2} parent=39 // pred_check_branch
        %295 = sbr.rel (%p293) target = $region44
      $region43: #{inception_forward.2} parent=39 // pred_region
        %s296 = smul.u32 2, %s21
        %p297 = scmp.lt.s32.totalorder %s20, 1
        %s298 = scalar_select %p297, %s20, 1
        %p299 = scmp.lt.s32.totalorder %s296, 1
        %s300 = scalar_select %p299, %s296, 1
        %s301 = smul.addr %s298, 2
        %s302 = sadd.s32 %s300, %s301
        %s303 = smul.addr %s302, 8
        %s304 = scalar_lea.vmem %s3, %s303
      $region44: #{inception_forward.2} parent=39 // pred_fallthru
        _
    $region40: #{inception_forward.2} parent=5 // pred_fallthru
      _
  $region6: #{inception_forward.2} parent=0 // loop_footer
    %s13 = sadd.s32 1, %s9
  $region7: #{inception_forward.2} parent=0 // loop_footer_branch
    %8 = sbr.rel target = $region3
  $region8: #{inception_forward.2} parent=0 // loop_exit
    _

// kernel: inception_forward.3
$region0: #{inception_forward.3}
  #allocation0 [shape = 'u32[]', space=smem, size = 0x4, offset = 0x4, fixed_abs, tag = 'smem constant byte address 0x4 - core index']
  #allocation1 [shape = 'u32[72,128]{1,0:T(1,128)}', space=vmem, size = 0x9000, scoped, tag = 'internal scratch']
  %s0 = inlined_call_operand.vmem [shape: f32[2,4,256], index: 0, kind: input, shape index: {}]
  %s1 = inlined_call_operand.vmem [shape: f32[2,4,256], index: 1, kind: input, shape index: {}]
  %s2 = inlined_call_operand.vmem [shape: f32[2,36,256], index: 2, kind: input, shape index: {}]
  %s3 = inlined_call_operand.vmem [shape: f32[2,100,256], index: 3, kind: input, shape index: {}]
  %s4 = inlined_call_operand.vmem [shape: f32[8,4], index: 4, kind: input, shape index: {}]
  %s5 = inlined_call_operand.vmem [shape: f32[8,36], index: 5, kind: input, shape index: {}]
  %s6 = inlined_call_operand.vmem [shape: f32[8,100], index: 6, kind: input, shape index: {}]
  %s7 = inlined_call_operand.vmem [shape: f32[8,4], index: 7, kind: input, shape index: {}]
  %s8 = inlined_call_operand.vmem [shape: f32[8,1], index: 8, kind: input, shape index: {}]
  %s9 = inlined_call_operand.vmem [shape: f32[8,1], index: 9, kind: input, shape index: {}]
  %s10 = inlined_call_operand.vmem [shape: f32[8,1], index: 10, kind: input, shape index: {}]
  %s11 = inlined_call_operand.vmem [shape: f32[8,1], index: 11, kind: input, shape index: {}]
  %s12 = inlined_call_operand.vmem [shape: f32[2,32,256], index: 12, kind: output, shape index: {}]
  %s13 = sld [smem:[#allocation0]]
  $region81: #{inception_forward.3} parent=0
    _
  %s15 = ssub.s32 1, %s13
  %s16 = scalar_select 0, %s15, %s13
  loop: start=0, step=1, limit=4
  $region2: #{inception_forward.3} parent=0 // loop_pre_header
    _
  $region3: #{inception_forward.3} parent=0 // loop_header
    %s18 = sphi 0, %s22
    %p19 = scmp.ge.s32.totalorder %s18, 4
    %s25 = sphi 0, %s37
    %s26 = sphi 0, %s33
    %s27 = sphi 0, %s25
    %s28 = sphi 0, %s26
    %s29 = sphi 0, %s27
    %s30 = sphi 0, %s28
    %s42 = sphi 0, %s44
    %s45 = sphi 0, %s42
    %s46 = sphi 0, %s45
    %s62 = sphi 0, %s46
    %s70 = sphi 0, %s72
    %s73 = sphi 0, %s70
    %s74 = sphi 0, %s73
    %s90 = sphi 0, %s74
    %s98 = sphi 0, %s100
    %s101 = sphi 0, %s98
    %s102 = sphi 0, %s101
    %s118 = sphi 0, %s102
    %s126 = sphi 0, %s128
    %s129 = sphi 0, %s126
    %s130 = sphi 0, %s129
    %s146 = sphi 0, %s130
    %s150 = sphi 0, %s150
    %s152 = sphi 0, %s150
    %s153 = sphi 0, %s152
    %s167 = sphi 0, %s153
    %s171 = sphi 0, %s171
    %s173 = sphi 0, %s171
    %s174 = sphi 0, %s173
    %s188 = sphi 0, %s174
    %s192 = sphi 0, %s192
    %s194 = sphi 0, %s192
    %s195 = sphi 0, %s194
    %s209 = sphi 0, %s195
    %s213 = sphi 0, %s213
    %s215 = sphi 0, %s213
    %s216 = sphi 0, %s215
    %s230 = sphi 0, %s216
    %s234 = sphi 0, %s234
    %s236 = sphi 0, %s234
    %s237 = sphi 0, %s236
    %s251 = sphi 0, %s237
    %s255 = sphi 0, %s255
    %s257 = sphi 0, %s255
    %s258 = sphi 0, %s257
    %s272 = sphi 0, %s258
    %s276 = sphi 0, %s276
    %s278 = sphi 0, %s276
    %s279 = sphi 0, %s278
    %s293 = sphi 0, %s279
    %s297 = sphi 0, %s297
    %s299 = sphi 0, %s297
    %s300 = sphi 0, %s299
    %s314 = sphi 0, %s300
    %s322 = sphi 0, %s324
    %s325 = sphi 0, %s322
    %s326 = sphi 0, %s325
    %s342 = sphi 0, %s326
  $region4: #{inception_forward.3} parent=0 // loop_header_branch
    %21 = sbr.rel (%p19) target = $region8
  $region5: #{inception_forward.3} parent=0 // loop_body
    %s23 = ssub.s32 %s18, 1
    %s24 = ssub.s32 %s18, 2
    %s31 = sadd.s32 1, %s26
    %p32 = scmp.ge.s32.totalorder %s31, 1
    %s33 = scalar_select %p32, 0, %s31
    %s34 = sadd.s32 1, %s25
    %s35 = scalar_select %p32, %s34, %s25
    %p36 = scmp.ge.s32.totalorder %s35, 2
    %s37 = scalar_select %p36, 0, %s35
    %s38 = ssub.s32 %s25, %s37
    %s39 = ssub.s32 %s26, %s33
    %s40 = sor.u32 %s38, %s39
    %p41 = scmp.eq.s32.totalorder %s40, 0
    %s43 = sadd.s32 %s42, 1
    %s44 = scalar_select %p41, %s42, %s43
    %p47 = pneg %p41
    %p48 = scmp.eq.s32.totalorder %s18, 1
    %p49 = por %p47, %p48
    %p50 = scmp.ne.s32.totalorder %s42, %s45
    %p51 = scmp.eq.s32.totalorder %s18, 0
    %p52 = por %p50, %p51
    %p53 = scmp.ne.s32.totalorder %s42, %s45
    %p54 = scmp.eq.s32.totalorder %s23, 1
    %p55 = por %p53, %p54
    %p56 = scmp.ne.s32.totalorder %s45, %s46
    %p57 = scmp.eq.s32.totalorder %s23, 0
    %p58 = por %p56, %p57
    %p59 = scmp.ne.s32.totalorder %s45, %s46
    %p60 = scmp.eq.s32.totalorder %s24, 1
    %p61 = por %p59, %p60
    %p63 = scmp.ne.s32.totalorder %s46, %s62
    %p64 = scmp.eq.s32.totalorder %s24, 0
    %p65 = por %p63, %p64
    %s66 = ssub.s32 %s25, %s37
    %s67 = ssub.s32 %s26, %s33
    %s68 = sor.u32 %s66, %s67
    %p69 = scmp.eq.s32.totalorder %s68, 0
    %s71 = sadd.s32 %s70, 1
    %s72 = scalar_select %p69, %s70, %s71
    %p75 = pneg %p69
    %p76 = scmp.eq.s32.totalorder %s18, 1
    %p77 = por %p75, %p76
    %p78 = scmp.ne.s32.totalorder %s70, %s73
    %p79 = scmp.eq.s32.totalorder %s18, 0
    %p80 = por %p78, %p79
    %p81 = scmp.ne.s32.totalorder %s70, %s73
    %p82 = scmp.eq.s32.totalorder %s23, 1
    %p83 = por %p81, %p82
    %p84 = scmp.ne.s32.totalorder %s73, %s74
    %p85 = scmp.eq.s32.totalorder %s23, 0
    %p86 = por %p84, %p85
    %p87 = scmp.ne.s32.totalorder %s73, %s74
    %p88 = scmp.eq.s32.totalorder %s24, 1
    %p89 = por %p87, %p88
    %p91 = scmp.ne.s32.totalorder %s74, %s90
    %p92 = scmp.eq.s32.totalorder %s24, 0
    %p93 = por %p91, %p92
    %s94 = ssub.s32 %s25, %s37
    %s95 = ssub.s32 %s26, %s33
    %s96 = sor.u32 %s94, %s95
    %p97 = scmp.eq.s32.totalorder %s96, 0
    %s99 = sadd.s32 %s98, 1
    %s100 = scalar_select %p97, %s98, %s99
    %p103 = pneg %p97
    %p104 = scmp.eq.s32.totalorder %s18, 1
    %p105 = por %p103, %p104
    %p106 = scmp.ne.s32.totalorder %s98, %s101
    %p107 = scmp.eq.s32.totalorder %s18, 0
    %p108 = por %p106, %p107
    %p109 = scmp.ne.s32.totalorder %s98, %s101
    %p110 = scmp.eq.s32.totalorder %s23, 1
    %p111 = por %p109, %p110
    %p112 = scmp.ne.s32.totalorder %s101, %s102
    %p113 = scmp.eq.s32.totalorder %s23, 0
    %p114 = por %p112, %p113
    %p115 = scmp.ne.s32.totalorder %s101, %s102
    %p116 = scmp.eq.s32.totalorder %s24, 1
    %p117 = por %p115, %p116
    %p119 = scmp.ne.s32.totalorder %s102, %s118
    %p120 = scmp.eq.s32.totalorder %s24, 0
    %p121 = por %p119, %p120
    %s122 = ssub.s32 %s25, %s37
    %s123 = ssub.s32 %s26, %s33
    %s124 = sor.u32 %s122, %s123
    %p125 = scmp.eq.s32.totalorder %s124, 0
    %s127 = sadd.s32 %s126, 1
    %s128 = scalar_select %p125, %s126, %s127
    %p131 = pneg %p125
    %p132 = scmp.eq.s32.totalorder %s18, 1
    %p133 = por %p131, %p132
    %p134 = scmp.ne.s32.totalorder %s126, %s129
    %p135 = scmp.eq.s32.totalorder %s18, 0
    %p136 = por %p134, %p135
    %p137 = scmp.ne.s32.totalorder %s126, %s129
    %p138 = scmp.eq.s32.totalorder %s23, 1
    %p139 = por %p137, %p138
    %p140 = scmp.ne.s32.totalorder %s129, %s130
    %p141 = scmp.eq.s32.totalorder %s23, 0
    %p142 = por %p140, %p141
    %p143 = scmp.ne.s32.totalorder %s129, %s130
    %p144 = scmp.eq.s32.totalorder %s24, 1
    %p145 = por %p143, %p144
    %p147 = scmp.ne.s32.totalorder %s130, %s146
    %p148 = scmp.eq.s32.totalorder %s24, 0
    %p149 = por %p147, %p148
    %s151 = sadd.s32 %s150, 1
    %p154 = scmp.eq.s32.totalorder %s18, 1
    %p155 = scmp.ne.s32.totalorder %s150, %s152
    %p156 = scmp.eq.s32.totalorder %s18, 0
    %p157 = por %p155, %p156
    %p158 = scmp.ne.s32.totalorder %s150, %s152
    %p159 = scmp.eq.s32.totalorder %s23, 1
    %p160 = por %p158, %p159
    %p161 = scmp.ne.s32.totalorder %s152, %s153
    %p162 = scmp.eq.s32.totalorder %s23, 0
    %p163 = por %p161, %p162
    %p164 = scmp.ne.s32.totalorder %s152, %s153
    %p165 = scmp.eq.s32.totalorder %s24, 1
    %p166 = por %p164, %p165
    %p168 = scmp.ne.s32.totalorder %s153, %s167
    %p169 = scmp.eq.s32.totalorder %s24, 0
    %p170 = por %p168, %p169
    %s172 = sadd.s32 %s171, 1
    %p175 = scmp.eq.s32.totalorder %s18, 1
    %p176 = scmp.ne.s32.totalorder %s171, %s173
    %p177 = scmp.eq.s32.totalorder %s18, 0
    %p178 = por %p176, %p177
    %p179 = scmp.ne.s32.totalorder %s171, %s173
    %p180 = scmp.eq.s32.totalorder %s23, 1
    %p181 = por %p179, %p180
    %p182 = scmp.ne.s32.totalorder %s173, %s174
    %p183 = scmp.eq.s32.totalorder %s23, 0
    %p184 = por %p182, %p183
    %p185 = scmp.ne.s32.totalorder %s173, %s174
    %p186 = scmp.eq.s32.totalorder %s24, 1
    %p187 = por %p185, %p186
    %p189 = scmp.ne.s32.totalorder %s174, %s188
    %p190 = scmp.eq.s32.totalorder %s24, 0
    %p191 = por %p189, %p190
    %s193 = sadd.s32 %s192, 1
    %p196 = scmp.eq.s32.totalorder %s18, 1
    %p197 = scmp.ne.s32.totalorder %s192, %s194
    %p198 = scmp.eq.s32.totalorder %s18, 0
    %p199 = por %p197, %p198
    %p200 = scmp.ne.s32.totalorder %s192, %s194
    %p201 = scmp.eq.s32.totalorder %s23, 1
    %p202 = por %p200, %p201
    %p203 = scmp.ne.s32.totalorder %s194, %s195
    %p204 = scmp.eq.s32.totalorder %s23, 0
    %p205 = por %p203, %p204
    %p206 = scmp.ne.s32.totalorder %s194, %s195
    %p207 = scmp.eq.s32.totalorder %s24, 1
    %p208 = por %p206, %p207
    %p210 = scmp.ne.s32.totalorder %s195, %s209
    %p211 = scmp.eq.s32.totalorder %s24, 0
    %p212 = por %p210, %p211
    %s214 = sadd.s32 %s213, 1
    %p217 = scmp.eq.s32.totalorder %s18, 1
    %p218 = scmp.ne.s32.totalorder %s213, %s215
    %p219 = scmp.eq.s32.totalorder %s18, 0
    %p220 = por %p218, %p219
    %p221 = scmp.ne.s32.totalorder %s213, %s215
    %p222 = scmp.eq.s32.totalorder %s23, 1
    %p223 = por %p221, %p222
    %p224 = scmp.ne.s32.totalorder %s215, %s216
    %p225 = scmp.eq.s32.totalorder %s23, 0
    %p226 = por %p224, %p225
    %p227 = scmp.ne.s32.totalorder %s215, %s216
    %p228 = scmp.eq.s32.totalorder %s24, 1
    %p229 = por %p227, %p228
    %p231 = scmp.ne.s32.totalorder %s216, %s230
    %p232 = scmp.eq.s32.totalorder %s24, 0
    %p233 = por %p231, %p232
    %s235 = sadd.s32 %s234, 1
    %p238 = scmp.eq.s32.totalorder %s18, 1
    %p239 = scmp.ne.s32.totalorder %s234, %s236
    %p240 = scmp.eq.s32.totalorder %s18, 0
    %p241 = por %p239, %p240
    %p242 = scmp.ne.s32.totalorder %s234, %s236
    %p243 = scmp.eq.s32.totalorder %s23, 1
    %p244 = por %p242, %p243
    %p245 = scmp.ne.s32.totalorder %s236, %s237
    %p246 = scmp.eq.s32.totalorder %s23, 0
    %p247 = por %p245, %p246
    %p248 = scmp.ne.s32.totalorder %s236, %s237
    %p249 = scmp.eq.s32.totalorder %s24, 1
    %p250 = por %p248, %p249
    %p252 = scmp.ne.s32.totalorder %s237, %s251
    %p253 = scmp.eq.s32.totalorder %s24, 0
    %p254 = por %p252, %p253
    %s256 = sadd.s32 %s255, 1
    %p259 = scmp.eq.s32.totalorder %s18, 1
    %p260 = scmp.ne.s32.totalorder %s255, %s257
    %p261 = scmp.eq.s32.totalorder %s18, 0
    %p262 = por %p260, %p261
    %p263 = scmp.ne.s32.totalorder %s255, %s257
    %p264 = scmp.eq.s32.totalorder %s23, 1
    %p265 = por %p263, %p264
    %p266 = scmp.ne.s32.totalorder %s257, %s258
    %p267 = scmp.eq.s32.totalorder %s23, 0
    %p268 = por %p266, %p267
    %p269 = scmp.ne.s32.totalorder %s257, %s258
    %p270 = scmp.eq.s32.totalorder %s24, 1
    %p271 = por %p269, %p270
    %p273 = scmp.ne.s32.totalorder %s258, %s272
    %p274 = scmp.eq.s32.totalorder %s24, 0
    %p275 = por %p273, %p274
    %s277 = sadd.s32 %s276, 1
    %p280 = scmp.eq.s32.totalorder %s18, 1
    %p281 = scmp.ne.s32.totalorder %s276, %s278
    %p282 = scmp.eq.s32.totalorder %s18, 0
    %p283 = por %p281, %p282
    %p284 = scmp.ne.s32.totalorder %s276, %s278
    %p285 = scmp.eq.s32.totalorder %s23, 1
    %p286 = por %p284, %p285
    %p287 = scmp.ne.s32.totalorder %s278, %s279
    %p288 = scmp.eq.s32.totalorder %s23, 0
    %p289 = por %p287, %p288
    %p290 = scmp.ne.s32.totalorder %s278, %s279
    %p291 = scmp.eq.s32.totalorder %s24, 1
    %p292 = por %p290, %p291
    %p294 = scmp.ne.s32.totalorder %s279, %s293
    %p295 = scmp.eq.s32.totalorder %s24, 0
    %p296 = por %p294, %p295
    %s298 = sadd.s32 %s297, 1
    %p301 = scmp.eq.s32.totalorder %s18, 1
    %p302 = scmp.ne.s32.totalorder %s297, %s299
    %p303 = scmp.eq.s32.totalorder %s18, 0
    %p304 = por %p302, %p303
    %p305 = scmp.ne.s32.totalorder %s297, %s299
    %p306 = scmp.eq.s32.totalorder %s23, 1
    %p307 = por %p305, %p306
    %p308 = scmp.ne.s32.totalorder %s299, %s300
    %p309 = scmp.eq.s32.totalorder %s23, 0
    %p310 = por %p308, %p309
    %p311 = scmp.ne.s32.totalorder %s299, %s300
    %p312 = scmp.eq.s32.totalorder %s24, 1
    %p313 = por %p311, %p312
    %p315 = scmp.ne.s32.totalorder %s300, %s314
    %p316 = scmp.eq.s32.totalorder %s24, 0
    %p317 = por %p315, %p316
    %s318 = ssub.s32 %s25, %s37
    %s319 = ssub.s32 %s26, %s33
    %s320 = sor.u32 %s318, %s319
    %p321 = scmp.eq.s32.totalorder %s320, 0
    %s323 = sadd.s32 %s322, 1
    %s324 = scalar_select %p321, %s322, %s323
    %p327 = pneg %p321
    %p328 = scmp.eq.s32.totalorder %s18, 1
    %p329 = por %p327, %p328
    %p330 = scmp.ne.s32.totalorder %s322, %s325
    %p331 = scmp.eq.s32.totalorder %s18, 0
    %p332 = por %p330, %p331
    %p333 = scmp.ne.s32.totalorder %s322, %s325
    %p334 = scmp.eq.s32.totalorder %s23, 1
    %p335 = por %p333, %p334
    %p336 = scmp.ne.s32.totalorder %s325, %s326
    %p337 = scmp.eq.s32.totalorder %s23, 0
    %p338 = por %p336, %p337
    %p339 = scmp.ne.s32.totalorder %s325, %s326
    %p340 = scmp.eq.s32.totalorder %s24, 1
    %p341 = por %p339, %p340
    %p343 = scmp.ne.s32.totalorder %s326, %s342
    %p344 = scmp.eq.s32.totalorder %s24, 0
    %p345 = por %p343, %p344
    %p346 = scmp.le.s32.totalorder 1, %s18
    %p347 = scmp.lt.s32.totalorder %s18, 3
    %p348 = pnand %p346, %p347
    %p349 = pneg %p348
    // Predicated region
    $region9: #{inception_forward.3} parent=5 // pred_check
      _
    $region10: #{inception_forward.3} parent=5 // pred_check_branch
      %351 = sbr.rel (%p348) target = $region12
    $region11: #{inception_forward.3} parent=5 // pred_region
      %s352 = ssub.s32 %s18, 1
      // Predicated region
      $region13: #{inception_forward.3} parent=11 // pred_check
        %p353 = pneg %p163
      $region14: #{inception_forward.3} parent=11 // pred_check_branch
        %355 = sbr.rel (%p353) target = $region16
      $region15: #{inception_forward.3} parent=11 // pred_region
        _
      $region16: #{inception_forward.3} parent=11 // pred_fallthru
        _
      // Predicated region
      $region17: #{inception_forward.3} parent=11 // pred_check
        %p356 = pneg %p184
      $region18: #{inception_forward.3} parent=11 // pred_check_branch
        %358 = sbr.rel (%p356) target = $region20
      $region19: #{inception_forward.3} parent=11 // pred_region
        _
      $region20: #{inception_forward.3} parent=11 // pred_fallthru
        _
      // Predicated region
      $region21: #{inception_forward.3} parent=11 // pred_check
        %p359 = pneg %p205
      $region22: #{inception_forward.3} parent=11 // pred_check_branch
        %361 = sbr.rel (%p359) target = $region24
      $region23: #{inception_forward.3} parent=11 // pred_region
        _
      $region24: #{inception_forward.3} parent=11 // pred_fallthru
        _
      // Predicated region
      $region25: #{inception_forward.3} parent=11 // pred_check
        %p362 = pneg %p226
      $region26: #{inception_forward.3} parent=11 // pred_check_branch
        %364 = sbr.rel (%p362) target = $region28
      $region27: #{inception_forward.3} parent=11 // pred_region
        _
      $region28: #{inception_forward.3} parent=11 // pred_fallthru
        _
      // Predicated region
      $region29: #{inception_forward.3} parent=11 // pred_check
        %p365 = pneg %p247
      $region30: #{inception_forward.3} parent=11 // pred_check_branch
        %367 = sbr.rel (%p365) target = $region32
      $region31: #{inception_forward.3} parent=11 // pred_region
        _
      $region32: #{inception_forward.3} parent=11 // pred_fallthru
        _
      // Predicated region
      $region33: #{inception_forward.3} parent=11 // pred_check
        %p368 = pneg %p268
      $region34: #{inception_forward.3} parent=11 // pred_check_branch
        %370 = sbr.rel (%p368) target = $region36
      $region35: #{inception_forward.3} parent=11 // pred_region
        _
      $region36: #{inception_forward.3} parent=11 // pred_fallthru
        _
      // Predicated region
      $region37: #{inception_forward.3} parent=11 // pred_check
        %p371 = pneg %p289
      $region38: #{inception_forward.3} parent=11 // pred_check_branch
        %373 = sbr.rel (%p371) target = $region40
      $region39: #{inception_forward.3} parent=11 // pred_region
        _
      $region40: #{inception_forward.3} parent=11 // pred_fallthru
        _
      // Predicated region
      $region41: #{inception_forward.3} parent=11 // pred_check
        %p374 = pneg %p310
      $region42: #{inception_forward.3} parent=11 // pred_check_branch
        %376 = sbr.rel (%p374) target = $region44
      $region43: #{inception_forward.3} parent=11 // pred_region
        _
      $region44: #{inception_forward.3} parent=11 // pred_fallthru
        _
    $region12: #{inception_forward.3} parent=5 // pred_fallthru
      _
    %p377 = scmp.lt.s32.totalorder %s18, 2
    // Predicated region
    $region45: #{inception_forward.3} parent=5 // pred_check
      %p378 = pneg %p377
    $region46: #{inception_forward.3} parent=5 // pred_check_branch
      %380 = sbr.rel (%p378) target = $region48
    $region47: #{inception_forward.3} parent=5 // pred_region
      // Predicated region
      $region49: #{inception_forward.3} parent=47 // pred_check
        %p381 = pneg %p52
      $region50: #{inception_forward.3} parent=47 // pred_check_branch
        %383 = sbr.rel (%p381) target = $region52
      $region51: #{inception_forward.3} parent=47 // pred_region
        %s384 = smul.u32 2, %s26
        %p385 = scmp.lt.s32.totalorder %s25, 1
        %s386 = scalar_select %p385, %s25, 1
        %p387 = scmp.lt.s32.totalorder %s384, 1
        %s388 = scalar_select %p387, %s384, 1
        %s389 = smul.addr %s386, 2
        %s390 = sadd.s32 %s388, %s389
        %s391 = smul.addr %s390, 4
        %s392 = scalar_lea.vmem %s0, %s391
        %s393 = smul.u32 2, %s26
      $region52: #{inception_forward.3} parent=47 // pred_fallthru
        _
      // Predicated region
      $region53: #{inception_forward.3} parent=47 // pred_check
        %p394 = pneg %p80
      $region54: #{inception_forward.3} parent=47 // pred_check_branch
        %396 = sbr.rel (%p394) target = $region56
      $region55: #{inception_forward.3} parent=47 // pred_region
        %s397 = smul.u32 2, %s26
        %p398 = scmp.lt.s32.totalorder %s25, 1
        %s399 = scalar_select %p398, %s25, 1
        %p400 = scmp.lt.s32.totalorder %s397, 1
        %s401 = scalar_select %p400, %s397, 1
        %s402 = smul.addr %s399, 2
        %s403 = sadd.s32 %s401, %s402
        %s404 = smul.addr %s403, 4
        %s405 = scalar_lea.vmem %s1, %s404
        %s406 = smul.u32 2, %s26
      $region56: #{inception_forward.3} parent=47 // pred_fallthru
        _
      // Predicated region
      $region57: #{inception_forward.3} parent=47 // pred_check
        %p407 = pneg %p108
      $region58: #{inception_forward.3} parent=47 // pred_check_branch
        %409 = sbr.rel (%p407) target = $region60
      $region59: #{inception_forward.3} parent=47 // pred_region
        %s410 = smul.u32 2, %s26
        %p411 = scmp.lt.s32.totalorder %s25, 1
        %s412 = scalar_select %p411, %s25, 1
        %p413 = scmp.lt.s32.totalorder %s410, 1
        %s414 = scalar_select %p413, %s410, 1
        %s415 = smul.addr %s412, 10
        %s416 = sadd.s32 %s414, %s415
        %s417 = smul.addr %s416, 8
        %s418 = scalar_lea.vmem %s2, %s417
        %s419 = smul.u32 2, %s26
      $region60: #{inception_forward.3} parent=47 // pred_fallthru
        _
      // Predicated region
      $region61: #{inception_forward.3} parent=47 // pred_check
        %p420 = pneg %p136
      $region62: #{inception_forward.3} parent=47 // pred_check_branch
        %422 = sbr.rel (%p420) target = $region64
      $region63: #{inception_forward.3} parent=47 // pred_region
        %s423 = smul.u32 2, %s26
        %p424 = scmp.lt.s32.totalorder %s25, 1
        %s425 = scalar_select %p424, %s25, 1
        %p426 = scmp.lt.s32.totalorder %s423, 1
        %s427 = scalar_select %p426, %s423, 1
        %s428 = smul.addr %s425, 26
        %s429 = sadd.s32 %s427, %s428
        %s430 = smul.addr %s429, 8
        %s431 = scalar_lea.vmem %s3, %s430
        %s432 = smul.u32 2, %s26
      $region64: #{inception_forward.3} parent=47 // pred_fallthru
        _
    $region48: #{inception_forward.3} parent=5 // pred_fallthru
      _
    %p433 = scmp.le.s32.totalorder 1, %s18
    %p434 = scmp.lt.s32.totalorder %s18, 3
    %p435 = pnand %p433, %p434
    %p436 = pneg %p435
    // Predicated region
    $region65: #{inception_forward.3} parent=5 // pred_check
      _
    $region66: #{inception_forward.3} parent=5 // pred_check_branch
      %438 = sbr.rel (%p435) target = $region68
    $region67: #{inception_forward.3} parent=5 // pred_region
      %s439 = ssub.s32 %s18, 1
      %s440 = smul.u32 2, %s28
      %p441 = scmp.lt.s32.totalorder %s27, 1
      %s442 = scalar_select %p441, %s27, 1
      %p443 = scmp.lt.s32.totalorder %s440, 1
      %s444 = scalar_select %p443, %s440, 1
      %s445 = smul.addr %s442, 2
      %s446 = sadd.s32 %s444, %s445
      %s447 = smul.addr %s446, 4
      %s448 = scalar_lea.vmem %s0, %s447
      %p449 = pneg %p58
      %p450 = pneg %p55
      %s451 = smul.u32 2, %s28
      %p452 = scmp.lt.s32.totalorder %s27, 1
      %s453 = scalar_select %p452, %s27, 1
      %p454 = scmp.lt.s32.totalorder %s451, 1
      %s455 = scalar_select %p454, %s451, 1
      %s456 = smul.addr %s453, 2
      %s457 = sadd.s32 %s455, %s456
      %s458 = smul.addr %s457, 4
      %s459 = scalar_lea.vmem %s1, %s458
      %p460 = pneg %p86
      %p461 = pneg %p83
      %s462 = smul.u32 2, %s28
      %p463 = scmp.lt.s32.totalorder %s27, 1
      %s464 = scalar_select %p463, %s27, 1
      %p465 = scmp.lt.s32.totalorder %s462, 1
      %s466 = scalar_select %p465, %s462, 1
      %s467 = smul.addr %s464, 10
      %s468 = sadd.s32 %s466, %s467
      %s469 = smul.addr %s468, 8
      %s470 = scalar_lea.vmem %s2, %s469
      %p471 = pneg %p114
      %p472 = pneg %p111
      %s473 = smul.u32 2, %s28
      %p474 = scmp.lt.s32.totalorder %s27, 1
      %s475 = scalar_select %p474, %s27, 1
      %p476 = scmp.lt.s32.totalorder %s473, 1
      %s477 = scalar_select %p476, %s473, 1
      %s478 = smul.addr %s475, 26
      %s479 = sadd.s32 %s477, %s478
      %s480 = smul.addr %s479, 8
      %s481 = scalar_lea.vmem %s3, %s480
      %p482 = pneg %p142
      %p483 = pneg %p139
      %p484 = pneg %p163
      %p485 = pneg %p160
      %p486 = pneg %p184
      %p487 = pneg %p181
      %p488 = pneg %p205
      %p489 = pneg %p202
      %p490 = pneg %p226
      %p491 = pneg %p223
      %p492 = pneg %p247
      %p493 = pneg %p244
      %p494 = pneg %p268
      %p495 = pneg %p265
      %p496 = pneg %p289
      %p497 = pneg %p286
      %p498 = pneg %p310
      %p499 = pneg %p307
      %p500 = pneg %p338
      %p501 = pneg %p335
      %s502 = smul.u32 2, %s28
      %p503 = scmp.lt.s32.totalorder %s27, 1
      %s504 = scalar_select %p503, %s27, 1
      %p505 = scmp.lt.s32.totalorder %s502, 1
      %s506 = scalar_select %p505, %s502, 1
      %s507 = smul.addr %s504, 8
      %s508 = sadd.s32 %s506, %s507
      %s509 = smul.addr %s508, 8
      %s510 = scalar_lea.vmem %s12, %s509
      %s511 = smul.u32 2, %s28
      %p512 = scmp.lt.s32.totalorder %s27, 1
      %s513 = scalar_select %p512, %s27, 1
      %p514 = scmp.lt.s32.totalorder %s511, 1
      %s515 = scalar_select %p514, %s511, 1
      %s516 = smul.addr %s513, 2
      %s517 = sadd.s32 %s515, %s516
      %s518 = smul.addr %s517, 4
      %s519 = scalar_lea.vmem %s0, %s518
      %s520 = smul.u32 2, %s28
      %s521 = smul.u32 2, %s28
      %p522 = scmp.lt.s32.totalorder %s27, 1
      %s523 = scalar_select %p522, %s27, 1
      %p524 = scmp.lt.s32.totalorder %s521, 1
      %s525 = scalar_select %p524, %s521, 1
      %s526 = smul.addr %s523, 2
      %s527 = sadd.s32 %s525, %s526
      %s528 = smul.addr %s527, 4
      %s529 = scalar_lea.vmem %s1, %s528
      %s530 = smul.u32 2, %s28
      %s531 = smul.u32 2, %s28
      %p532 = scmp.lt.s32.totalorder %s27, 1
      %s533 = scalar_select %p532, %s27, 1
      %p534 = scmp.lt.s32.totalorder %s531, 1
      %s535 = scalar_select %p534, %s531, 1
      %s536 = smul.addr %s533, 10
      %s537 = sadd.s32 %s535, %s536
      %s538 = smul.addr %s537, 8
      %s539 = scalar_lea.vmem %s2, %s538
      %s540 = smul.u32 2, %s28
      %s541 = smul.u32 2, %s28
      %p542 = scmp.lt.s32.totalorder %s27, 1
      %s543 = scalar_select %p542, %s27, 1
      %p544 = scmp.lt.s32.totalorder %s541, 1
      %s545 = scalar_select %p544, %s541, 1
      %s546 = smul.addr %s543, 26
      %s547 = sadd.s32 %s545, %s546
      %s548 = smul.addr %s547, 8
      %s549 = scalar_lea.vmem %s3, %s548
      %s550 = smul.u32 2, %s28
      %s551 = smul.u32 2, %s28
      %p552 = scmp.lt.s32.totalorder %s27, 1
      %s553 = scalar_select %p552, %s27, 1
      %p554 = scmp.lt.s32.totalorder %s551, 1
      %s555 = scalar_select %p554, %s551, 1
      %s556 = smul.addr %s553, 8
      %s557 = sadd.s32 %s555, %s556
      %s558 = smul.addr %s557, 8
      %s559 = scalar_lea.vmem %s12, %s558
      %s560 = smul.u32 2, %s28
      %v561 = vld [vmem:[%s519] sm:$0xff]
      %v562 = vld [vmem:[%s4] sm:$0xff]
      %v563 = vld [vmem:[%s8] sm:$0xff]
      %565 = vset.pattern.permute.xlu0 0
      %566 = vperm.xlu0 %565, %v563
      %v567 = vpop.permute.xlu0 %566
      %570 = vst [vmem:[#allocation1] ss:$2 sm:$0xff] %v561
      %v571 = vld.sshfl [vmem:[#allocation1] sm:$0xff pattern:$0x75316420]
      %v572 = vld.sshfl [vmem:[#allocation1 + $0x8] sm:$0xff pattern:$0x75316420]
      %vm573 = vcmask 31744
      %v575 = vsel %vm573, %v562, 0
      %vm577 = vcmask 1043456
      %v578 = vsel %vm577, %v571, 0
      %v580 = vsel %vm577, %v572, 0
      %582 = vmatpush.msra.mxu0 0.0
      %583 = vmatpush.msra.mxu0 0.0
      %584 = vmatpush.msra.mxu0 0.0
      %585 = vmatpush.msra.mxu0 0.0
      %586 = vmatpush.msra.mxu0 0.0
      %587 = vmatpush.msra.mxu0 0.0
      %588 = vmatpush.msra.mxu0 0.0
      %589 = vmatpush.msra.mxu0 0.0
      %590 = vmatpush.msra.mxu0 0.0
      %591 = vmatpush.msra.mxu0 0.0
      %592 = vmatpush.msra.mxu0 0.0
      %593 = vmatpush.msra.mxu0 0.0
      %594 = vmatpush.msra.mxu0 0.0
      %595 = vmatpush.msra.mxu0 0.0
      %596 = vmatpush.msra.mxu0 0.0
      %597 = vmatpush.msra.mxu0 %v578
      %598 = vmatmul.f32.gmra.mxu0 %v575
      %v599 = vpop.f32.mrf.mxu0
      %v600 = vadd.f32 %v567, %v599
      %601 = vdwg.mxu0
      %602 = vmatpush.msra.mxu0 0.0
      %603 = vmatpush.msra.mxu0 0.0
      %604 = vmatpush.msra.mxu0 0.0
      %605 = vmatpush.msra.mxu0 0.0
      %606 = vmatpush.msra.mxu0 0.0
      %607 = vmatpush.msra.mxu0 0.0
      %608 = vmatpush.msra.mxu0 0.0
      %609 = vmatpush.msra.mxu0 0.0
      %610 = vmatpush.msra.mxu0 0.0
      %611 = vmatpush.msra.mxu0 0.0
      %612 = vmatpush.msra.mxu0 0.0
      %613 = vmatpush.msra.mxu0 0.0
      %614 = vmatpush.msra.mxu0 0.0
      %615 = vmatpush.msra.mxu0 0.0
      %616 = vmatpush.msra.mxu0 0.0
      %617 = vmatpush.msra.mxu0 %v580
      %618 = vmatmul.f32.gmra.mxu0 %v575
      %v619 = vpop.f32.mrf.mxu0
      %v620 = vadd.f32 %v567, %v619
      %621 = vdwg.mxu0
      %v622 = vmax.f32 %v600, 0.0
      %v623 = vmax.f32 %v620, 0.0
      %v624 = vld [vmem:[%s539] sm:$0xff]
      %v625 = vld [vmem:[%s539 + $0x8] sm:$0xff]
      %v626 = vld [vmem:[%s539 + $0x10] sm:$0xff]
      %v627 = vld [vmem:[%s539 + $0x18] sm:$0xff]
      %v628 = vld [vmem:[%s539 + $0x20] sm:$0xff]
      %v629 = vld [vmem:[%s539 + $0x28] sm:$0xff]
      %v630 = vld [vmem:[%s539 + $0x30] sm:$0xff]
      %v631 = vld [vmem:[%s539 + $0x38] sm:$0xff]
      %v632 = vld [vmem:[%s539 + $0x40] sm:$0xf]
      %v633 = vld [vmem:[%s539 + $0x48] sm:$0xf]
      %v634 = vld [vmem:[%s5] sm:$0xff]
      %v635 = vld [vmem:[%s9] sm:$0xff]
      %637 = vset.pattern.permute.xlu0 0
      %638 = vperm.xlu0 %637, %v635
      %v639 = vpop.permute.xlu0 %638
      %vm641 = vcmask 293888
      %v643 = vsel %vm641, %v634, 0
      %v646 = vsel %vm577, %v632, 0
      %v649 = vsel %vm577, %v633, 0
      %651 = vmatpush.msra.mxu0 0.0
      %652 = vmatpush.msra.mxu0 0.0
      %653 = vmatpush.msra.mxu0 0.0
      %654 = vmatpush.msra.mxu0 0.0
      %655 = vmatpush.msra.mxu0 0.0
      %656 = vmatpush.msra.mxu0 0.0
      %657 = vmatpush.msra.mxu0 0.0
      %658 = vmatpush.msra.mxu0 0.0
      %659 = vmatpush.msra.mxu0 0.0
      %660 = vmatpush.msra.mxu0 0.0
      %661 = vmatpush.msra.mxu0 0.0
      %662 = vmatpush.msra.mxu0 %v646
      %663 = vmatpush.msra.mxu0 %v630
      %664 = vmatpush.msra.mxu0 %v628
      %665 = vmatpush.msra.mxu0 %v626
      %666 = vmatpush.msra.mxu0 %v624
      %667 = vmatmul.f32.gmra.mxu0 %v643
      %v668 = vpop.f32.mrf.mxu0
      %v669 = vadd.f32 %v639, %v668
      %670 = vdwg.mxu0
      %671 = vmatpush.msra.mxu0 0.0
      %672 = vmatpush.msra.mxu0 0.0
      %673 = vmatpush.msra.mxu0 0.0
      %674 = vmatpush.msra.mxu0 0.0
      %675 = vmatpush.msra.mxu0 0.0
      %676 = vmatpush.msra.mxu0 0.0
      %677 = vmatpush.msra.mxu0 0.0
      %678 = vmatpush.msra.mxu0 0.0
      %679 = vmatpush.msra.mxu0 0.0
      %680 = vmatpush.msra.mxu0 0.0
      %681 = vmatpush.msra.mxu0 0.0
      %682 = vmatpush.msra.mxu0 %v649
      %683 = vmatpush.msra.mxu0 %v631
      %684 = vmatpush.msra.mxu0 %v629
      %685 = vmatpush.msra.mxu0 %v627
      %686 = vmatpush.msra.mxu0 %v625
      %687 = vmatmul.f32.gmra.mxu0 %v643
      %v688 = vpop.f32.mrf.mxu0
      %v689 = vadd.f32 %v639, %v688
      %690 = vdwg.mxu0
      %v691 = vmax.f32 %v669, 0.0
      %v692 = vmax.f32 %v689, 0.0
      %v693 = vld [vmem:[%s549] sm:$0xff]
      %v694 = vld [vmem:[%s549 + $0x8] sm:$0xff]
      %v695 = vld [vmem:[%s549 + $0x10] sm:$0xff]
      %v696 = vld [vmem:[%s549 + $0x18] sm:$0xff]
      %v697 = vld [vmem:[%s549 + $0x20] sm:$0xff]
      %v698 = vld [vmem:[%s549 + $0x28] sm:$0xff]
      %v699 = vld [vmem:[%s549 + $0x30] sm:$0xff]
      %v700 = vld [vmem:[%s549 + $0x38] sm:$0xff]
      %v701 = vld [vmem:[%s549 + $0x40] sm:$0xff]
      %v702 = vld [vmem:[%s549 + $0x48] sm:$0xff]
      %v703 = vld [vmem:[%s549 + $0x50] sm:$0xff]
      %v704 = vld [vmem:[%s549 + $0x58] sm:$0xff]
      %v705 = vld [vmem:[%s549 + $0x60] sm:$0xff]
      %v706 = vld [vmem:[%s549 + $0x68] sm:$0xff]
      %v707 = vld [vmem:[%s549 + $0x70] sm:$0xff]
      %v708 = vld [vmem:[%s549 + $0x78] sm:$0xff]
      %v709 = vld [vmem:[%s549 + $0x80] sm:$0xff]
      %v710 = vld [vmem:[%s549 + $0x88] sm:$0xff]
      %v711 = vld [vmem:[%s549 + $0x90] sm:$0xff]
      %v712 = vld [vmem:[%s549 + $0x98] sm:$0xff]
      %v713 = vld [vmem:[%s549 + $0xa0] sm:$0xff]
      %v714 = vld [vmem:[%s549 + $0xa8] sm:$0xff]
      %v715 = vld [vmem:[%s549 + $0xb0] sm:$0xff]
      %v716 = vld [vmem:[%s549 + $0xb8] sm:$0xff]
      %v717 = vld [vmem:[%s549 + $0xc0] sm:$0xf]
      %v718 = vld [vmem:[%s549 + $0xc8] sm:$0xf]
      %v719 = vld [vmem:[%s6] sm:$0xff]
      %v720 = vld [vmem:[%s10] sm:$0xff]
      %722 = vset.pattern.permute.xlu0 0
      %723 = vperm.xlu0 %722, %v720
      %v724 = vpop.permute.xlu0 %723
      %vm726 = vcmask 818176
      %v728 = vsel %vm726, %v719, 0
      %v731 = vsel %vm577, %v717, 0
      %v734 = vsel %vm577, %v718, 0
      %736 = vmatpush.msra.mxu0 0.0
      %737 = vmatpush.msra.mxu0 0.0
      %738 = vmatpush.msra.mxu0 0.0
      %739 = vmatpush.msra.mxu0 %v731
      %740 = vmatpush.msra.mxu0 %v715
      %741 = vmatpush.msra.mxu0 %v713
      %742 = vmatpush.msra.mxu0 %v711
      %743 = vmatpush.msra.mxu0 %v709
      %744 = vmatpush.msra.mxu0 %v707
      %745 = vmatpush.msra.mxu0 %v705
      %746 = vmatpush.msra.mxu0 %v703
      %747 = vmatpush.msra.mxu0 %v701
      %748 = vmatpush.msra.mxu0 %v699
      %749 = vmatpush.msra.mxu0 %v697
      %750 = vmatpush.msra.mxu0 %v695
      %751 = vmatpush.msra.mxu0 %v693
      %752 = vmatmul.f32.gmra.mxu0 %v728
      %v753 = vpop.f32.mrf.mxu0
      %v754 = vadd.f32 %v724, %v753
      %755 = vdwg.mxu0
      %756 = vmatpush.msra.mxu0 0.0
      %757 = vmatpush.msra.mxu0 0.0
      %758 = vmatpush.msra.mxu0 0.0
      %759 = vmatpush.msra.mxu0 %v734
      %760 = vmatpush.msra.mxu0 %v716
      %761 = vmatpush.msra.mxu0 %v714
      %762 = vmatpush.msra.mxu0 %v712
      %763 = vmatpush.msra.mxu0 %v710
      %764 = vmatpush.msra.mxu0 %v708
      %765 = vmatpush.msra.mxu0 %v706
      %766 = vmatpush.msra.mxu0 %v704
      %767 = vmatpush.msra.mxu0 %v702
      %768 = vmatpush.msra.mxu0 %v700
      %769 = vmatpush.msra.mxu0 %v698
      %770 = vmatpush.msra.mxu0 %v696
      %771 = vmatpush.msra.mxu0 %v694
      %772 = vmatmul.f32.gmra.mxu0 %v728
      %v773 = vpop.f32.mrf.mxu0
      %v774 = vadd.f32 %v724, %v773
      %775 = vdwg.mxu0
      %v776 = vmax.f32 %v754, 0.0
      %v777 = vmax.f32 %v774, 0.0
      %v778 = vld [vmem:[%s529] sm:$0xff]
      %v779 = vld [vmem:[%s7] sm:$0xff]
      %v780 = vld [vmem:[%s11] sm:$0xff]
      %782 = vset.pattern.permute.xlu0 0
      %783 = vperm.xlu0 %782, %v780
      %v784 = vpop.permute.xlu0 %783
      %787 = vst [vmem:[#allocation1] ss:$2 sm:$0xff] %v778
      %v788 = vld.sshfl [vmem:[#allocation1] sm:$0xff pattern:$0x75316420]
      %v789 = vld.sshfl [vmem:[#allocation1 + $0x8] sm:$0xff pattern:$0x75316420]
      %v791 = vsel %vm573, %v779, 0
      %v793 = vsel %vm577, %v788, 0
      %v795 = vsel %vm577, %v789, 0
      %797 = vmatpush.msra.mxu0 0.0
      %798 = vmatpush.msra.mxu0 0.0
      %799 = vmatpush.msra.mxu0 0.0
      %800 = vmatpush.msra.mxu0 0.0
      %801 = vmatpush.msra.mxu0 0.0
      %802 = vmatpush.msra.mxu0 0.0
      %803 = vmatpush.msra.mxu0 0.0
      %804 = vmatpush.msra.mxu0 0.0
      %805 = vmatpush.msra.mxu0 0.0
      %806 = vmatpush.msra.mxu0 0.0
      %807 = vmatpush.msra.mxu0 0.0
      %808 = vmatpush.msra.mxu0 0.0
      %809 = vmatpush.msra.mxu0 0.0
      %810 = vmatpush.msra.mxu0 0.0
      %811 = vmatpush.msra.mxu0 0.0
      %812 = vmatpush.msra.mxu0 %v793
      %813 = vmatmul.f32.gmra.mxu0 %v791
      %v814 = vpop.f32.mrf.mxu0
      %v815 = vadd.f32 %v784, %v814
      %816 = vdwg.mxu0
      %817 = vmatpush.msra.mxu0 0.0
      %818 = vmatpush.msra.mxu0 0.0
      %819 = vmatpush.msra.mxu0 0.0
      %820 = vmatpush.msra.mxu0 0.0
      %821 = vmatpush.msra.mxu0 0.0
      %822 = vmatpush.msra.mxu0 0.0
      %823 = vmatpush.msra.mxu0 0.0
      %824 = vmatpush.msra.mxu0 0.0
      %825 = vmatpush.msra.mxu0 0.0
      %826 = vmatpush.msra.mxu0 0.0
      %827 = vmatpush.msra.mxu0 0.0
      %828 = vmatpush.msra.mxu0 0.0
      %829 = vmatpush.msra.mxu0 0.0
      %830 = vmatpush.msra.mxu0 0.0
      %831 = vmatpush.msra.mxu0 0.0
      %832 = vmatpush.msra.mxu0 %v795
      %833 = vmatmul.f32.gmra.mxu0 %v791
      %v834 = vpop.f32.mrf.mxu0
      %v835 = vadd.f32 %v784, %v834
      %836 = vdwg.mxu0
      %v837 = vmax.f32 %v815, 0.0
      %v838 = vmax.f32 %v835, 0.0
      %839 = vst [vmem:[%s559] sm:$0xff] %v622
      %840 = vst [vmem:[%s559 + $0x8] sm:$0xff] %v623
      %841 = vst [vmem:[%s559 + $0x10] sm:$0xff] %v691
      %842 = vst [vmem:[%s559 + $0x18] sm:$0xff] %v692
      %843 = vst [vmem:[%s559 + $0x20] sm:$0xff] %v776
      %844 = vst [vmem:[%s559 + $0x28] sm:$0xff] %v777
      %845 = vst [vmem:[%s559 + $0x30] sm:$0xff] %v837
      %846 = vst [vmem:[%s559 + $0x38] sm:$0xff] %v838
      %s847 = smul.u32 2, %s28
      %p848 = scmp.lt.s32.totalorder %s27, 1
      %s849 = scalar_select %p848, %s27, 1
      %p850 = scmp.lt.s32.totalorder %s847, 1
      %s851 = scalar_select %p850, %s847, 1
      %s852 = smul.addr %s849, 8
      %s853 = sadd.s32 %s851, %s852
      %s854 = smul.addr %s853, 8
      %s855 = scalar_lea.vmem %s12, %s854
      // Predicated region
      $region69: #{inception_forward.3} parent=67 // pred_check
        %p856 = pneg %p335
      $region70: #{inception_forward.3} parent=67 // pred_check_branch
        %858 = sbr.rel (%p856) target = $region72
      $region71: #{inception_forward.3} parent=67 // pred_region
        %s859 = smul.u32 2, %s28
      $region72: #{inception_forward.3} parent=67 // pred_fallthru
        _
    $region68: #{inception_forward.3} parent=5 // pred_fallthru
      _
    %p860 = scmp.le.s32.totalorder 2, %s18
    // Predicated region
    $region73: #{inception_forward.3} parent=5 // pred_check
      %p861 = pneg %p860
    $region74: #{inception_forward.3} parent=5 // pred_check_branch
      %863 = sbr.rel (%p861) target = $region76
    $region75: #{inception_forward.3} parent=5 // pred_region
      %s864 = ssub.s32 %s18, 2
      // Predicated region
      $region77: #{inception_forward.3} parent=75 // pred_check
        %p865 = pneg %p341
      $region78: #{inception_forward.3} parent=75 // pred_check_branch
        %867 = sbr.rel (%p865) target = $region80
      $region79: #{inception_forward.3} parent=75 // pred_region
        %s868 = smul.u32 2, %s30
        %p869 = scmp.lt.s32.totalorder %s29, 1
        %s870 = scalar_select %p869, %s29, 1
        %p871 = scmp.lt.s32.totalorder %s868, 1
        %s872 = scalar_select %p871, %s868, 1
        %s873 = smul.addr %s870, 8
        %s874 = sadd.s32 %s872, %s873
        %s875 = smul.addr %s874, 8
        %s876 = scalar_lea.vmem %s12, %s875
      $region80: #{inception_forward.3} parent=75 // pred_fallthru
        _
    $region76: #{inception_forward.3} parent=5 // pred_fallthru
      _
  $region6: #{inception_forward.3} parent=0 // loop_footer
    %s22 = sadd.s32 1, %s18
  $region7: #{inception_forward.3} parent=0 // loop_footer_branch
    %17 = sbr.rel target = $region3
  $region8: #{inception_forward.3} parent=0 // loop_exit
    _

</llo_original>
